<compile_context>
chip_gen: v7x
topology: tpu7x:2x2x1
jax: 0.10.0
libtpu: 0.0.40
codegen_flags: <defaults>
</compile_context>

<pallas_src>
from math import sqrt

import jax
import jax.numpy as jnp
from jax.experimental import pallas as pl
from jax.experimental.pallas import tpu as pltpu


def _swish(z):
    return z * jax.nn.sigmoid(z)


def _round_up(a, m):
    return ((a + m - 1) // m) * m


def embedding_block_kernel(ids_ref, rbf_ref,
                           ew_ref, w_rbf_ref, b_rbf_ref,
                           w3_ref, b_ref,
                           o_ref):
    tile_e = ids_ref.shape[0]
    ncp2 = ew_ref.shape[0]          # 2 * NCp (stacked EW1 / EW2 table)

    # --- rbf branch: swish(rbf @ W_rbf + b_rbf), f32 accumulation -----------
    rbf_bf = rbf_ref[...].astype(w_rbf_ref.dtype)          # in-kernel cast
    h_rbf = jnp.dot(rbf_bf, w_rbf_ref[...],
                    preferred_element_type=jnp.float32) + b_rbf_ref[...]
    h_rbf = _swish(h_rbf)                                   # f32, [tile_e, H]

    # --- fused embedding gather: one two-hot matmul against resident table --
    # two_hot(e, c) = 1 at c = x[i_e] and at c = NCp + x[j_e]
    # two_hot @ [EW1; EW2] == x_emb[i] @ W1 + x_emb[j] @ W2   (exact)
    iota = jax.lax.broadcasted_iota(jnp.int32, (tile_e, ncp2), 1)
    ii = ids_ref[:, 0:1]                                    # [tile_e, 1] int32
    jj = ids_ref[:, 1:2]                                    # already NCp-offset
    two_hot = ((ii == iota) | (jj == iota)).astype(ew_ref.dtype)

    # --- fused "concat" linear: xi@W1 + xj@W2 + h@W3 + b ---------------------
    z = (jnp.dot(two_hot, ew_ref[...], preferred_element_type=jnp.float32)
         + jnp.dot(h_rbf.astype(w3_ref.dtype), w3_ref[...],
                   preferred_element_type=jnp.float32)
         + b_ref[...])
    o_ref[...] = _swish(z).astype(o_ref.dtype)


def _choose_tile(E, tile_e, min_tile=256):
    """Pick the edge tile: big for overhead, >=2 grid steps for v7x megacore."""
    if tile_e >= E:
        return E                                    # single full-extent block
    t = min(tile_e, max(min_tile, (E + 1) // 2))    # keep >= 2 grid steps
    t = _round_up(t, 8)                             # sublane alignment
    return E if t >= E else t


def embedding_block_forward(x, rbf, i, j, params, *, tile_e=2048,
                            out_dtype=jnp.float32):
    """x: [N] int node types, rbf: [E, R] float, i/j: [E] int edge indices."""
    emb_w = params["emb_w"]          # [NC, H] f32
    w_rbf = params["w_rbf"]          # [R, H]  (in x out)
    b_rbf = params["b_rbf"]          # [1, H]
    w1, w2, w3 = params["w1"], params["w2"], params["w3"]   # [H, H] each
    b = params["b"]                  # [1, H]

    E, R = rbf.shape
    NC, H = emb_w.shape

    # Fold embedding lookup + first two thirds of the concat-linear into one
    # stacked per-class table EW = [emb_w @ W1 ; emb_w @ W2], resident in VMEM.
    # (Assumes all node ids lie in [0, NC) — out-of-range ids would silently
    # select a zero row instead of erroring like torch.nn.Embedding.)
    NCp = _round_up(NC, 8)
    ew1 = jnp.pad(jnp.dot(emb_w, w1), ((0, NCp - NC), (0, 0)))
    ew2 = jnp.pad(jnp.dot(emb_w, w2), ((0, NCp - NC), (0, 0)))
    ew = jnp.concatenate([ew1, ew2], axis=0).astype(jnp.bfloat16)   # [2NCp, H]

    w_rbf_bf = w_rbf.astype(jnp.bfloat16)
    w3_bf = w3.astype(jnp.bfloat16)

    # One packed int32 id stream: col 0 = x[i], col 1 = NCp + x[j].
    ii = jnp.take(x, i, axis=0).astype(jnp.int32)
    jj = jnp.take(x, j, axis=0).astype(jnp.int32) + NCp
    ids = jnp.stack([ii, jj], axis=1)                               # [E, 2]

    tile = _choose_tile(E, tile_e)
    grid = (pl.cdiv(E, tile),)       # ragged last block -> Pallas masks stores

    full = lambda shape: pl.BlockSpec(shape, lambda e: (0, 0))

    out = pl.pallas_call(
        embedding_block_kernel,
        out_shape=jax.ShapeDtypeStruct((E, H), out_dtype),
        grid_spec=pltpu.PrefetchScalarGridSpec(
            num_scalar_prefetch=0,
            grid=grid,
            in_specs=[
                pl.BlockSpec((tile, 2), lambda e: (e, 0)),   # ids   int32
                pl.BlockSpec((tile, R), lambda e: (e, 0)),   # rbf   f32 (cast in-kernel)
                full((2 * NCp, H)),                          # EW    (resident, bf16)
                full((R, H)),                                # w_rbf bf16
                full((1, H)),                                # b_rbf f32
                full((H, H)),                                # w3    bf16
                full((1, H)),                                # b     f32
            ],
            out_specs=pl.BlockSpec((tile, H), lambda e: (e, 0)),
        ),
        compiler_params=pltpu.CompilerParams(
            dimension_semantics=("parallel",)),
    )(ids, rbf, ew, w_rbf_bf, b_rbf, w3_bf, b)

    return out


def make_params(key, node_class, num_radial, hidden_channels):
    k = jax.random.split(key, 6)
    H, R = hidden_channels, num_radial
    # Embedding: uniform(-sqrt(3), sqrt(3)), like the PyTorch module.
    emb_w = jax.random.uniform(k[0], (node_class, H),
                               minval=-sqrt(3), maxval=sqrt(3),
                               dtype=jnp.float32)
    bnd_rbf = 1.0 / sqrt(R)
    w_rbf = jax.random.uniform(k[1], (R, H), minval=-bnd_rbf, maxval=bnd_rbf,
                               dtype=jnp.float32)
    b_rbf = jax.random.uniform(k[2], (1, H), minval=-bnd_rbf, maxval=bnd_rbf,
                               dtype=jnp.float32)
    bnd = 1.0 / sqrt(3 * H)
    w_cat = jax.random.uniform(k[3], (3 * H, H), minval=-bnd, maxval=bnd,
                               dtype=jnp.float32)
    b = jax.random.uniform(k[4], (1, H), minval=-bnd, maxval=bnd,
                           dtype=jnp.float32)
    return {
        "emb_w": emb_w,
        "w_rbf": w_rbf,
        "b_rbf": b_rbf,
        "w1": w_cat[:H],
        "w2": w_cat[H:2 * H],
        "w3": w_cat[2 * H:],
        "b": b,
    }


def reference_forward(x, rbf, i, j, params):
    x_emb = jnp.take(params["emb_w"], x, axis=0)
    h_rbf = _swish(rbf @ params["w_rbf"] + params["b_rbf"])
    w_cat = jnp.concatenate([params["w1"], params["w2"], params["w3"]], axis=0)
    z = jnp.concatenate([x_emb[i], x_emb[j], h_rbf], axis=-1) @ w_cat + params["b"]
    return _swish(z)


if __name__ == "__main__":
    node_class = 5
    num_radial = 6
    hidden_channels = 32
    N, E = 12, 300          # E not a multiple of the tile -> exercises masking

    key = jax.random.PRNGKey(0)
    kp, kx, kr, ki, kj = jax.random.split(key, 5)

    params = make_params(kp, node_class, num_radial, hidden_channels)
    x = jax.random.randint(kx, (N,), 0, node_class, dtype=jnp.int32)
    rbf = jax.random.normal(kr, (E, num_radial), dtype=jnp.float32)
    i = jax.random.randint(ki, (E,), 0, N, dtype=jnp.int32)
    j = jax.random.randint(kj, (E,), 0, N, dtype=jnp.int32)

    ref = reference_forward(x, rbf, i, j, params)

    # Default tiling: single full-extent block (E <= tile_e).
    out = embedding_block_forward(x, rbf, i, j, params)
    out = jax.block_until_ready(out)
    assert out.shape == (E, hidden_channels)
    # bf16 MXU operands -> relaxed tolerance vs. the pure-f32 reference.
    assert jnp.allclose(out, ref, atol=2e-2, rtol=2e-2), (
        float(jnp.max(jnp.abs(out - ref))))

    # Small tile: multi-step grid with a ragged, masked last block.
    out2 = embedding_block_forward(x, rbf, i, j, params, tile_e=128)
    out2 = jax.block_until_ready(out2)
    assert jnp.allclose(out2, ref, atol=2e-2, rtol=2e-2), (
        float(jnp.max(jnp.abs(out2 - ref))))

    print("KERNEL_OK")
</pallas_src>

<mosaic_0001>
module attributes {stable_mosaic.version = 11 : i64} {
  func.func @embedding_block_kernel(%arg0: i32, %arg1: memref<300x2xi32, #tpu.memory_space<vmem>>, %arg2: memref<300x6xf32, #tpu.memory_space<vmem>>, %arg3: memref<16x32xbf16, #tpu.memory_space<vmem>>, %arg4: memref<6x32xbf16, #tpu.memory_space<vmem>>, %arg5: memref<1x32xf32, #tpu.memory_space<vmem>>, %arg6: memref<32x32xbf16, #tpu.memory_space<vmem>>, %arg7: memref<1x32xf32, #tpu.memory_space<vmem>>, %arg8: memref<300x32xf32, #tpu.memory_space<vmem>>) attributes {dimension_semantics = [#tpu.dimension_semantics<parallel>], iteration_bounds = array<i64: 1>, scalar_prefetch = 0 : i64, scratch_operands = 0 : i64, tpu.core_type = #tpu.core_type<tc>, window_params = [{transform_indices = @transform_0, window_bounds = array<i64: 300, 2>}, {transform_indices = @transform_1, window_bounds = array<i64: 300, 6>}, {pipeline_mode = #tpu.pipeline_mode<synchronous>, transform_indices = @transform_2, window_bounds = array<i64: 16, 32>}, {pipeline_mode = #tpu.pipeline_mode<synchronous>, transform_indices = @transform_3, window_bounds = array<i64: 6, 32>}, {pipeline_mode = #tpu.pipeline_mode<synchronous>, transform_indices = @transform_4, window_bounds = array<i64: 1, 32>}, {pipeline_mode = #tpu.pipeline_mode<synchronous>, transform_indices = @transform_5, window_bounds = array<i64: 32, 32>}, {pipeline_mode = #tpu.pipeline_mode<synchronous>, transform_indices = @transform_6, window_bounds = array<i64: 1, 32>}, {transform_indices = @transform_7, window_bounds = array<i64: 300, 32>}]} {
    %c0 = arith.constant 0 : index
    %c0_0 = arith.constant 0 : index
    %0 = vector.load %arg2[%c0, %c0_0] : memref<300x6xf32, #tpu.memory_space<vmem>>, vector<300x6xf32>
    %1 = arith.truncf %0 : vector<300x6xf32> to vector<300x6xbf16>
    %c0_1 = arith.constant 0 : index
    %c0_2 = arith.constant 0 : index
    %2 = vector.load %arg4[%c0_1, %c0_2] : memref<6x32xbf16, #tpu.memory_space<vmem>>, vector<6x32xbf16>
    %cst = arith.constant dense<0.000000e+00> : vector<300x32xf32>
    %3 = tpu.matmul %1, %2, %cst {dimension_numbers = #tpu.dot_dimension_numbers<[1], [0], [0], [1], [0, 0, 1, 1], [], []>} : vector<300x6xbf16>, vector<6x32xbf16>, vector<300x32xf32> -> vector<300x32xf32>
    %c0_3 = arith.constant 0 : index
    %c0_4 = arith.constant 0 : index
    %4 = vector.load %arg5[%c0_3, %c0_4] : memref<1x32xf32, #tpu.memory_space<vmem>>, vector<1x32xf32>
    %5 = vector.broadcast %4 : vector<1x32xf32> to vector<300x32xf32>
    %6 = arith.addf %3, %5 : vector<300x32xf32>
    %7 = arith.negf %6 : vector<300x32xf32>
    %8 = math.exp %7 : vector<300x32xf32>
    %cst_5 = arith.constant 1.000000e+00 : f32
    %9 = vector.broadcast %cst_5 : f32 to vector<300x32xf32>
    %10 = arith.addf %9, %8 : vector<300x32xf32>
    %11 = arith.divf %9, %10 : vector<300x32xf32>
    %12 = arith.mulf %6, %11 : vector<300x32xf32>
    %13 = tpu.iota {dimensions = array<i32: 1>} : vector<300x16xi32>
    %c0_6 = arith.constant 0 : index
    %c0_7 = arith.constant 0 : index
    %14 = vector.load %arg1[%c0_6, %c0_7] : memref<300x2xi32, #tpu.memory_space<vmem>>, vector<300x1xi32>
    %c0_8 = arith.constant 0 : index
    %c1 = arith.constant 1 : index
    %15 = vector.load %arg1[%c0_8, %c1] : memref<300x2xi32, #tpu.memory_space<vmem>>, vector<300x1xi32>
    %16 = vector.broadcast %14 : vector<300x1xi32> to vector<300x16xi32>
    %17 = arith.cmpi eq, %16, %13 : vector<300x16xi32>
    %18 = vector.broadcast %15 : vector<300x1xi32> to vector<300x16xi32>
    %19 = arith.cmpi eq, %18, %13 : vector<300x16xi32>
    %20 = arith.ori %17, %19 : vector<300x16xi1>
    %21 = arith.extui %20 : vector<300x16xi1> to vector<300x16xi32>
    %22 = arith.sitofp %21 : vector<300x16xi32> to vector<300x16xf32>
    %23 = arith.truncf %22 : vector<300x16xf32> to vector<300x16xbf16>
    %c0_9 = arith.constant 0 : index
    %c0_10 = arith.constant 0 : index
    %24 = vector.load %arg3[%c0_9, %c0_10] : memref<16x32xbf16, #tpu.memory_space<vmem>>, vector<16x32xbf16>
    %cst_11 = arith.constant dense<0.000000e+00> : vector<300x32xf32>
    %25 = tpu.matmul %23, %24, %cst_11 {dimension_numbers = #tpu.dot_dimension_numbers<[1], [0], [0], [1], [0, 0, 1, 1], [], []>} : vector<300x16xbf16>, vector<16x32xbf16>, vector<300x32xf32> -> vector<300x32xf32>
    %26 = arith.truncf %12 : vector<300x32xf32> to vector<300x32xbf16>
    %c0_12 = arith.constant 0 : index
    %c0_13 = arith.constant 0 : index
    %27 = vector.load %arg6[%c0_12, %c0_13] : memref<32x32xbf16, #tpu.memory_space<vmem>>, vector<32x32xbf16>
    %cst_14 = arith.constant dense<0.000000e+00> : vector<300x32xf32>
    %28 = tpu.matmul %26, %27, %cst_14 {dimension_numbers = #tpu.dot_dimension_numbers<[1], [0], [0], [1], [0, 0, 1, 1], [], []>} : vector<300x32xbf16>, vector<32x32xbf16>, vector<300x32xf32> -> vector<300x32xf32>
    %29 = arith.addf %25, %28 : vector<300x32xf32>
    %c0_15 = arith.constant 0 : index
    %c0_16 = arith.constant 0 : index
    %30 = vector.load %arg7[%c0_15, %c0_16] : memref<1x32xf32, #tpu.memory_space<vmem>>, vector<1x32xf32>
    %31 = vector.broadcast %30 : vector<1x32xf32> to vector<300x32xf32>
    %32 = arith.addf %29, %31 : vector<300x32xf32>
    %33 = arith.negf %32 : vector<300x32xf32>
    %34 = math.exp %33 : vector<300x32xf32>
    %cst_17 = arith.constant 1.000000e+00 : f32
    %35 = vector.broadcast %cst_17 : f32 to vector<300x32xf32>
    %36 = arith.addf %35, %34 : vector<300x32xf32>
    %37 = arith.divf %35, %36 : vector<300x32xf32>
    %38 = arith.mulf %32, %37 : vector<300x32xf32>
    %c0_18 = arith.constant 0 : index
    %c0_19 = arith.constant 0 : index
    %39 = vector.load %arg8[%c0_18, %c0_19] : memref<300x32xf32, #tpu.memory_space<vmem>>, vector<300x32xf32>
    tpu.vector_store %arg8[%c0_18, %c0_19], %38 {strides = array<i32>} : memref<300x32xf32, #tpu.memory_space<vmem>>, vector<300x32xf32>,
    return
  }
  func.func @transform_0(%arg0: i32) -> (i32, i32) {
    %c0_i32 = arith.constant 0 : i32
    %c0_i32_0 = arith.constant 0 : i32
    return %arg0, %c0_i32 : i32, i32
  }
  func.func @transform_1(%arg0: i32) -> (i32, i32) {
    %c0_i32 = arith.constant 0 : i32
    %c0_i32_0 = arith.constant 0 : i32
    return %arg0, %c0_i32 : i32, i32
  }
  func.func @transform_2(%arg0: i32) -> (i32, i32) {
    %c0_i32 = arith.constant 0 : i32
    %c0_i32_0 = arith.constant 0 : i32
    %c0_i32_1 = arith.constant 0 : i32
    return %c0_i32, %c0_i32_0 : i32, i32
  }
  func.func @transform_3(%arg0: i32) -> (i32, i32) {
    %c0_i32 = arith.constant 0 : i32
    %c0_i32_0 = arith.constant 0 : i32
    %c0_i32_1 = arith.constant 0 : i32
    return %c0_i32, %c0_i32_0 : i32, i32
  }
  func.func @transform_4(%arg0: i32) -> (i32, i32) {
    %c0_i32 = arith.constant 0 : i32
    %c0_i32_0 = arith.constant 0 : i32
    %c0_i32_1 = arith.constant 0 : i32
    return %c0_i32, %c0_i32_0 : i32, i32
  }
  func.func @transform_5(%arg0: i32) -> (i32, i32) {
    %c0_i32 = arith.constant 0 : i32
    %c0_i32_0 = arith.constant 0 : i32
    %c0_i32_1 = arith.constant 0 : i32
    return %c0_i32, %c0_i32_0 : i32, i32
  }
  func.func @transform_6(%arg0: i32) -> (i32, i32) {
    %c0_i32 = arith.constant 0 : i32
    %c0_i32_0 = arith.constant 0 : i32
    %c0_i32_1 = arith.constant 0 : i32
    return %c0_i32, %c0_i32_0 : i32, i32
  }
  func.func @transform_7(%arg0: i32) -> (i32, i32) {
    %c0_i32 = arith.constant 0 : i32
    %c0_i32_0 = arith.constant 0 : i32
    return %arg0, %c0_i32 : i32, i32
  }
}

</mosaic_0001>

<llo_original>
// kernel: tpu_custom_call.1
$region0: #{tpu_custom_call.1}
  #allocation0 [shape = 'u32[]', space=smem, size = 0x4, offset = 0x4, fixed_abs, tag = 'smem constant byte address 0x4 - core index']
  #allocation1 [shape = 'u32[144,128]{1,0:T(1,128)}', space=vmem, size = 0x12000, scoped, tag = 'internal scratch']
  %s0 = inlined_call_operand.vmem [shape: s32[300,2], index: 0, kind: input, shape index: {}]
  %s1 = inlined_call_operand.vmem [shape: f32[300,6], index: 1, kind: input, shape index: {}]
  %s2 = inlined_call_operand.vmem [shape: bf16[16,32], index: 2, kind: input, shape index: {}]
  %s3 = inlined_call_operand.vmem [shape: bf16[6,32], index: 3, kind: input, shape index: {}]
  %s4 = inlined_call_operand.vmem [shape: f32[1,32], index: 4, kind: input, shape index: {}]
  %s5 = inlined_call_operand.vmem [shape: bf16[32,32], index: 5, kind: input, shape index: {}]
  %s6 = inlined_call_operand.vmem [shape: f32[1,32], index: 6, kind: input, shape index: {}]
  %s7 = inlined_call_operand.vmem [shape: f32[300,32], index: 7, kind: output, shape index: {}]
  %s8 = sld [smem:[#allocation0]]
  $region38: #{tpu_custom_call.1} parent=0
    _
  %s10 = ssub.s32 1, %s8
  %s11 = scalar_select 0, %s10, %s8
  // Predicated region
  $region2: #{tpu_custom_call.1} parent=0 // pred_check
    _
  $region3: #{tpu_custom_call.1} parent=0 // pred_check_branch
    %13 = sbr.rel (0) target = $region5
  $region4: #{tpu_custom_call.1} parent=0 // pred_region
    _
  $region5: #{tpu_custom_call.1} parent=0 // pred_fallthru
    _
  // Predicated region
  $region6: #{tpu_custom_call.1} parent=0 // pred_check
    _
  $region7: #{tpu_custom_call.1} parent=0 // pred_check_branch
    %15 = sbr.rel (0) target = $region9
  $region8: #{tpu_custom_call.1} parent=0 // pred_region
    _
  $region9: #{tpu_custom_call.1} parent=0 // pred_fallthru
    _
  // Predicated region
  $region10: #{tpu_custom_call.1} parent=0 // pred_check
    _
  $region11: #{tpu_custom_call.1} parent=0 // pred_check_branch
    %17 = sbr.rel (0) target = $region13
  $region12: #{tpu_custom_call.1} parent=0 // pred_region
    _
  $region13: #{tpu_custom_call.1} parent=0 // pred_fallthru
    _
  // Predicated region
  $region14: #{tpu_custom_call.1} parent=0 // pred_check
    _
  $region15: #{tpu_custom_call.1} parent=0 // pred_check_branch
    %19 = sbr.rel (0) target = $region17
  $region16: #{tpu_custom_call.1} parent=0 // pred_region
    _
  $region17: #{tpu_custom_call.1} parent=0 // pred_fallthru
    _
  // Predicated region
  $region18: #{tpu_custom_call.1} parent=0 // pred_check
    _
  $region19: #{tpu_custom_call.1} parent=0 // pred_check_branch
    %21 = sbr.rel (0) target = $region21
  $region20: #{tpu_custom_call.1} parent=0 // pred_region
    _
  $region21: #{tpu_custom_call.1} parent=0 // pred_fallthru
    _
  // Predicated region
  $region22: #{tpu_custom_call.1} parent=0 // pred_check
    _
  $region23: #{tpu_custom_call.1} parent=0 // pred_check_branch
    %23 = sbr.rel (0) target = $region25
  $region24: #{tpu_custom_call.1} parent=0 // pred_region
    _
  $region25: #{tpu_custom_call.1} parent=0 // pred_fallthru
    _
  // Predicated region
  $region26: #{tpu_custom_call.1} parent=0 // pred_check
    _
  $region27: #{tpu_custom_call.1} parent=0 // pred_check_branch
    %25 = sbr.rel (0) target = $region29
  $region28: #{tpu_custom_call.1} parent=0 // pred_region
    _
  $region29: #{tpu_custom_call.1} parent=0 // pred_fallthru
    _
  %v27 = vld [vmem:[%s1] sm:$0xff]
  %v28 = vld [vmem:[%s1 + $0x8] sm:$0xff]
  %v29 = vld [vmem:[%s1 + $0x10] sm:$0xff]
  %v30 = vld [vmem:[%s1 + $0x18] sm:$0xff]
  %v31 = vld [vmem:[%s1 + $0x20] sm:$0xff]
  %v32 = vld [vmem:[%s1 + $0x28] sm:$0xff]
  %v33 = vld [vmem:[%s1 + $0x30] sm:$0xff]
  %v34 = vld [vmem:[%s1 + $0x38] sm:$0xff]
  %v35 = vld [vmem:[%s1 + $0x40] sm:$0xff]
  %v36 = vld [vmem:[%s1 + $0x48] sm:$0xff]
  %v37 = vld [vmem:[%s1 + $0x50] sm:$0xff]
  %v38 = vld [vmem:[%s1 + $0x58] sm:$0xff]
  %v39 = vld [vmem:[%s1 + $0x60] sm:$0xff]
  %v40 = vld [vmem:[%s1 + $0x68] sm:$0xff]
  %v41 = vld [vmem:[%s1 + $0x70] sm:$0xff]
  %v42 = vld [vmem:[%s1 + $0x78] sm:$0xff]
  %v43 = vld [vmem:[%s1 + $0x80] sm:$0xff]
  %v44 = vld [vmem:[%s1 + $0x88] sm:$0xff]
  %v45 = vld [vmem:[%s1 + $0x90] sm:$0xff]
  %v46 = vld [vmem:[%s1 + $0x98] sm:$0xff]
  %v47 = vld [vmem:[%s1 + $0xa0] sm:$0xff]
  %v48 = vld [vmem:[%s1 + $0xa8] sm:$0xff]
  %v49 = vld [vmem:[%s1 + $0xb0] sm:$0xff]
  %v50 = vld [vmem:[%s1 + $0xb8] sm:$0xff]
  %v51 = vld [vmem:[%s1 + $0xc0] sm:$0xff]
  %v52 = vld [vmem:[%s1 + $0xc8] sm:$0xff]
  %v53 = vld [vmem:[%s1 + $0xd0] sm:$0xff]
  %v54 = vld [vmem:[%s1 + $0xd8] sm:$0xff]
  %v55 = vld [vmem:[%s1 + $0xe0] sm:$0xff]
  %v56 = vld [vmem:[%s1 + $0xe8] sm:$0xff]
  %v57 = vld [vmem:[%s1 + $0xf0] sm:$0xff]
  %v58 = vld [vmem:[%s1 + $0xf8] sm:$0xff]
  %v59 = vld [vmem:[%s1 + $0x100] sm:$0xff]
  %v60 = vld [vmem:[%s1 + $0x108] sm:$0xff]
  %v61 = vld [vmem:[%s1 + $0x110] sm:$0xff]
  %v62 = vld [vmem:[%s1 + $0x118] sm:$0xff]
  %v63 = vld [vmem:[%s1 + $0x120] sm:$0xff]
  %v64 = vld [vmem:[%s1 + $0x128] sm:$0xf]
  %v65 = vpack.c.bf16 %v28, %v27
  %v66 = vpack.c.bf16 %v30, %v29
  %v67 = vpack.c.bf16 %v32, %v31
  %v68 = vpack.c.bf16 %v34, %v33
  %v69 = vpack.c.bf16 %v36, %v35
  %v70 = vpack.c.bf16 %v38, %v37
  %v71 = vpack.c.bf16 %v40, %v39
  %v72 = vpack.c.bf16 %v42, %v41
  %v73 = vpack.c.bf16 %v44, %v43
  %v74 = vpack.c.bf16 %v46, %v45
  %v75 = vpack.c.bf16 %v48, %v47
  %v76 = vpack.c.bf16 %v50, %v49
  %v77 = vpack.c.bf16 %v52, %v51
  %v78 = vpack.c.bf16 %v54, %v53
  %v79 = vpack.c.bf16 %v56, %v55
  %v80 = vpack.c.bf16 %v58, %v57
  %v81 = vpack.c.bf16 %v60, %v59
  %v82 = vpack.c.bf16 %v62, %v61
  %v83 = vpack.c.bf16 %v64, %v63
  %v84 = vld [vmem:[%s3] sm:$0x7]
  %v85 = vld [vmem:[%s4] sm:$0x1]
  %v87 = vlaneseq
  %v88 = vshrl.u32 %v87, 7
  %v89 = vsub.s32 0, %v88
  %v90 = vrot.slane %v85, %v89
  %vm92 = vcmask 48128
  %v94 = vsel %vm92, %v65, 0
  %v97 = vsel %vm92, %v66, 0
  %v100 = vsel %vm92, %v67, 0
  %v103 = vsel %vm92, %v68, 0
  %v106 = vsel %vm92, %v69, 0
  %v109 = vsel %vm92, %v70, 0
  %v112 = vsel %vm92, %v71, 0
  %v115 = vsel %vm92, %v72, 0
  %v118 = vsel %vm92, %v73, 0
  %v121 = vsel %vm92, %v74, 0
  %v124 = vsel %vm92, %v75, 0
  %v127 = vsel %vm92, %v76, 0
  %v130 = vsel %vm92, %v77, 0
  %v133 = vsel %vm92, %v78, 0
  %v136 = vsel %vm92, %v79, 0
  %v139 = vsel %vm92, %v80, 0
  %v142 = vsel %vm92, %v81, 0
  %v145 = vsel %vm92, %v82, 0
  %v148 = vsel %vm92, %v83, 0
  %vm150 = vcmask 1042432
  %v152 = vsel %vm150, %v84, 0
  %154 = vmatprep.subr.bf16.mxu0 0
  %155 = vmatpush1.bf16.msra.mxu0 %v152
  %156 = vmatprep.subr.bf16.mxu0 0
  %157 = vmatpush1.bf16.msra.mxu0 0
  %158 = vmatprep.subr.bf16.mxu0 0
  %159 = vmatpush1.bf16.msra.mxu0 0
  %160 = vmatprep.subr.bf16.mxu0 0
  %161 = vmatpush1.bf16.msra.mxu0 0
  %162 = vmatprep.subr.bf16.mxu0 0
  %163 = vmatpush1.bf16.msra.mxu0 0
  %164 = vmatprep.subr.bf16.mxu0 0
  %165 = vmatpush1.bf16.msra.mxu0 0
  %166 = vmatprep.subr.bf16.mxu0 0
  %167 = vmatpush1.bf16.msra.mxu0 0
  %168 = vmatprep.subr.bf16.mxu0 0
  %169 = vmatpush1.bf16.msra.mxu0 0
  %170 = vmatprep.subr.bf16.mxu0 0
  %171 = vmatpush1.bf16.msra.mxu0 0
  %172 = vmatprep.subr.bf16.mxu0 0
  %173 = vmatpush1.bf16.msra.mxu0 0
  %174 = vmatprep.subr.bf16.mxu0 0
  %175 = vmatpush1.bf16.msra.mxu0 0
  %176 = vmatprep.subr.bf16.mxu0 0
  %177 = vmatpush1.bf16.msra.mxu0 0
  %178 = vmatprep.subr.bf16.mxu0 0
  %179 = vmatpush1.bf16.msra.mxu0 0
  %180 = vmatprep.subr.bf16.mxu0 0
  %181 = vmatpush1.bf16.msra.mxu0 0
  %182 = vmatprep.subr.bf16.mxu0 0
  %183 = vmatpush1.bf16.msra.mxu0 0
  %184 = vmatprep.subr.bf16.mxu0 0
  %185 = vmatpush1.bf16.msra.mxu0 0
  %186 = vmatprep.mubr.bf16.mxu0 0
  %187 = vmatmul.mubr.bf16.gmra.mrb[0].mxu0 %v94
  %v188 = vpop.f32.mrb[0].mxu0
  %v189 = vadd.f32 %v90, %v188
  %v190 = vpop.f32.mrb[0].mxu0
  %v191 = vpop.f32.mrb[0].mxu0
  %v192 = vadd.f32 %v90, %v191
  %v193 = vpop.f32.mrb[0].mxu0
  %194 = vmatprep.mubr.bf16.mxu0 0
  %195 = vmatmul.mubr.bf16.gmra.mrb[0].mxu0 %v97
  %v196 = vpop.f32.mrb[0].mxu0
  %v197 = vadd.f32 %v90, %v196
  %v198 = vpop.f32.mrb[0].mxu0
  %v199 = vpop.f32.mrb[0].mxu0
  %v200 = vadd.f32 %v90, %v199
  %v201 = vpop.f32.mrb[0].mxu0
  %202 = vmatprep.mubr.bf16.mxu0 0
  %203 = vmatmul.mubr.bf16.gmra.mrb[0].mxu0 %v100
  %v204 = vpop.f32.mrb[0].mxu0
  %v205 = vadd.f32 %v90, %v204
  %v206 = vpop.f32.mrb[0].mxu0
  %v207 = vpop.f32.mrb[0].mxu0
  %v208 = vadd.f32 %v90, %v207
  %v209 = vpop.f32.mrb[0].mxu0
  %210 = vmatprep.mubr.bf16.mxu0 0
  %211 = vmatmul.mubr.bf16.gmra.mrb[0].mxu0 %v103
  %v212 = vpop.f32.mrb[0].mxu0
  %v213 = vadd.f32 %v90, %v212
  %v214 = vpop.f32.mrb[0].mxu0
  %v215 = vpop.f32.mrb[0].mxu0
  %v216 = vadd.f32 %v90, %v215
  %v217 = vpop.f32.mrb[0].mxu0
  %218 = vmatprep.mubr.bf16.mxu0 0
  %219 = vmatmul.mubr.bf16.gmra.mrb[0].mxu0 %v106
  %v220 = vpop.f32.mrb[0].mxu0
  %v221 = vadd.f32 %v90, %v220
  %v222 = vpop.f32.mrb[0].mxu0
  %v223 = vpop.f32.mrb[0].mxu0
  %v224 = vadd.f32 %v90, %v223
  %v225 = vpop.f32.mrb[0].mxu0
  %226 = vmatprep.mubr.bf16.mxu0 0
  %227 = vmatmul.mubr.bf16.gmra.mrb[0].mxu0 %v109
  %v228 = vpop.f32.mrb[0].mxu0
  %v229 = vadd.f32 %v90, %v228
  %v230 = vpop.f32.mrb[0].mxu0
  %v231 = vpop.f32.mrb[0].mxu0
  %v232 = vadd.f32 %v90, %v231
  %v233 = vpop.f32.mrb[0].mxu0
  %234 = vmatprep.mubr.bf16.mxu0 0
  %235 = vmatmul.mubr.bf16.gmra.mrb[0].mxu0 %v112
  %v236 = vpop.f32.mrb[0].mxu0
  %v237 = vadd.f32 %v90, %v236
  %v238 = vpop.f32.mrb[0].mxu0
  %v239 = vpop.f32.mrb[0].mxu0
  %v240 = vadd.f32 %v90, %v239
  %v241 = vpop.f32.mrb[0].mxu0
  %242 = vmatprep.mubr.bf16.mxu0 0
  %243 = vmatmul.mubr.bf16.gmra.mrb[0].mxu0 %v115
  %v244 = vpop.f32.mrb[0].mxu0
  %v245 = vadd.f32 %v90, %v244
  %v246 = vpop.f32.mrb[0].mxu0
  %v247 = vpop.f32.mrb[0].mxu0
  %v248 = vadd.f32 %v90, %v247
  %v249 = vpop.f32.mrb[0].mxu0
  %250 = vmatprep.mubr.bf16.mxu0 0
  %251 = vmatmul.mubr.bf16.gmra.mrb[0].mxu0 %v118
  %v252 = vpop.f32.mrb[0].mxu0
  %v253 = vadd.f32 %v90, %v252
  %v254 = vpop.f32.mrb[0].mxu0
  %v255 = vpop.f32.mrb[0].mxu0
  %v256 = vadd.f32 %v90, %v255
  %v257 = vpop.f32.mrb[0].mxu0
  %258 = vmatprep.mubr.bf16.mxu0 0
  %259 = vmatmul.mubr.bf16.gmra.mrb[0].mxu0 %v121
  %v260 = vpop.f32.mrb[0].mxu0
  %v261 = vadd.f32 %v90, %v260
  %v262 = vpop.f32.mrb[0].mxu0
  %v263 = vpop.f32.mrb[0].mxu0
  %v264 = vadd.f32 %v90, %v263
  %v265 = vpop.f32.mrb[0].mxu0
  %266 = vmatprep.mubr.bf16.mxu0 0
  %267 = vmatmul.mubr.bf16.gmra.mrb[0].mxu0 %v124
  %v268 = vpop.f32.mrb[0].mxu0
  %v269 = vadd.f32 %v90, %v268
  %v270 = vpop.f32.mrb[0].mxu0
  %v271 = vpop.f32.mrb[0].mxu0
  %v272 = vadd.f32 %v90, %v271
  %v273 = vpop.f32.mrb[0].mxu0
  %274 = vmatprep.mubr.bf16.mxu0 0
  %275 = vmatmul.mubr.bf16.gmra.mrb[0].mxu0 %v127
  %v276 = vpop.f32.mrb[0].mxu0
  %v277 = vadd.f32 %v90, %v276
  %v278 = vpop.f32.mrb[0].mxu0
  %v279 = vpop.f32.mrb[0].mxu0
  %v280 = vadd.f32 %v90, %v279
  %v281 = vpop.f32.mrb[0].mxu0
  %282 = vmatprep.mubr.bf16.mxu0 0
  %283 = vmatmul.mubr.bf16.gmra.mrb[0].mxu0 %v130
  %v284 = vpop.f32.mrb[0].mxu0
  %v285 = vadd.f32 %v90, %v284
  %v286 = vpop.f32.mrb[0].mxu0
  %v287 = vpop.f32.mrb[0].mxu0
  %v288 = vadd.f32 %v90, %v287
  %v289 = vpop.f32.mrb[0].mxu0
  %290 = vmatprep.mubr.bf16.mxu0 0
  %291 = vmatmul.mubr.bf16.gmra.mrb[0].mxu0 %v133
  %v292 = vpop.f32.mrb[0].mxu0
  %v293 = vadd.f32 %v90, %v292
  %v294 = vpop.f32.mrb[0].mxu0
  %v295 = vpop.f32.mrb[0].mxu0
  %v296 = vadd.f32 %v90, %v295
  %v297 = vpop.f32.mrb[0].mxu0
  %298 = vmatprep.mubr.bf16.mxu0 0
  %299 = vmatmul.mubr.bf16.gmra.mrb[0].mxu0 %v136
  %v300 = vpop.f32.mrb[0].mxu0
  %v301 = vadd.f32 %v90, %v300
  %v302 = vpop.f32.mrb[0].mxu0
  %v303 = vpop.f32.mrb[0].mxu0
  %v304 = vadd.f32 %v90, %v303
  %v305 = vpop.f32.mrb[0].mxu0
  %306 = vmatprep.mubr.bf16.mxu0 0
  %307 = vmatmul.mubr.bf16.gmra.mrb[0].mxu0 %v139
  %v308 = vpop.f32.mrb[0].mxu0
  %v309 = vadd.f32 %v90, %v308
  %v310 = vpop.f32.mrb[0].mxu0
  %v311 = vpop.f32.mrb[0].mxu0
  %v312 = vadd.f32 %v90, %v311
  %v313 = vpop.f32.mrb[0].mxu0
  %314 = vmatprep.mubr.bf16.mxu0 0
  %315 = vmatmul.mubr.bf16.gmra.mrb[0].mxu0 %v142
  %v316 = vpop.f32.mrb[0].mxu0
  %v317 = vadd.f32 %v90, %v316
  %v318 = vpop.f32.mrb[0].mxu0
  %v319 = vpop.f32.mrb[0].mxu0
  %v320 = vadd.f32 %v90, %v319
  %v321 = vpop.f32.mrb[0].mxu0
  %322 = vmatprep.mubr.bf16.mxu0 0
  %323 = vmatmul.mubr.bf16.gmra.mrb[0].mxu0 %v145
  %v324 = vpop.f32.mrb[0].mxu0
  %v325 = vadd.f32 %v90, %v324
  %v326 = vpop.f32.mrb[0].mxu0
  %v327 = vpop.f32.mrb[0].mxu0
  %v328 = vadd.f32 %v90, %v327
  %v329 = vpop.f32.mrb[0].mxu0
  %330 = vmatprep.mubr.bf16.mxu0 0
  %331 = vmatmul.mubr.bf16.gmra.mrb[0].mxu0 %v148
  %v332 = vpop.f32.mrb[0].mxu0
  %v333 = vadd.f32 %v90, %v332
  %v334 = vpop.f32.mrb[0].mxu0
  %v335 = vpop.f32.mrb[0].mxu0
  %v336 = vadd.f32 %v90, %v335
  %v337 = vpop.f32.mrb[0].mxu0
  %338 = vdwg.mxu0
  %v339 = vxor.u32 %v189, 2147483648
  %v340 = vxor.u32 %v192, 2147483648
  %v341 = vxor.u32 %v197, 2147483648
  %v342 = vxor.u32 %v200, 2147483648
  %v343 = vxor.u32 %v205, 2147483648
  %v344 = vxor.u32 %v208, 2147483648
  %v345 = vxor.u32 %v213, 2147483648
  %v346 = vxor.u32 %v216, 2147483648
  %v347 = vxor.u32 %v221, 2147483648
  %v348 = vxor.u32 %v224, 2147483648
  %v349 = vxor.u32 %v229, 2147483648
  %v350 = vxor.u32 %v232, 2147483648
  %v351 = vxor.u32 %v237, 2147483648
  %v352 = vxor.u32 %v240, 2147483648
  %v353 = vxor.u32 %v245, 2147483648
  %v354 = vxor.u32 %v248, 2147483648
  %v355 = vxor.u32 %v253, 2147483648
  %v356 = vxor.u32 %v256, 2147483648
  %v357 = vxor.u32 %v261, 2147483648
  %v358 = vxor.u32 %v264, 2147483648
  %v359 = vxor.u32 %v269, 2147483648
  %v360 = vxor.u32 %v272, 2147483648
  %v361 = vxor.u32 %v277, 2147483648
  %v362 = vxor.u32 %v280, 2147483648
  %v363 = vxor.u32 %v285, 2147483648
  %v364 = vxor.u32 %v288, 2147483648
  %v365 = vxor.u32 %v293, 2147483648
  %v366 = vxor.u32 %v296, 2147483648
  %v367 = vxor.u32 %v301, 2147483648
  %v368 = vxor.u32 %v304, 2147483648
  %v369 = vxor.u32 %v309, 2147483648
  %v370 = vxor.u32 %v312, 2147483648
  %v371 = vxor.u32 %v317, 2147483648
  %v372 = vxor.u32 %v320, 2147483648
  %v373 = vxor.u32 %v325, 2147483648
  %v374 = vxor.u32 %v328, 2147483648
  %v375 = vxor.u32 %v333, 2147483648
  %v376 = vxor.u32 %v336, 2147483648
  %v377 = vmul.f32 %v339, 1.442695
  %v378 = vpow.pop %v377
  %v379 = vmul.f32 %v340, 1.442695
  %v380 = vpow.pop %v379
  %v381 = vmul.f32 %v341, 1.442695
  %v382 = vpow.pop %v381
  %v383 = vmul.f32 %v342, 1.442695
  %v384 = vpow.pop %v383
  %v385 = vmul.f32 %v343, 1.442695
  %v386 = vpow.pop %v385
  %v387 = vmul.f32 %v344, 1.442695
  %v388 = vpow.pop %v387
  %v389 = vmul.f32 %v345, 1.442695
  %v390 = vpow.pop %v389
  %v391 = vmul.f32 %v346, 1.442695
  %v392 = vpow.pop %v391
  %v393 = vmul.f32 %v347, 1.442695
  %v394 = vpow.pop %v393
  %v395 = vmul.f32 %v348, 1.442695
  %v396 = vpow.pop %v395
  %v397 = vmul.f32 %v349, 1.442695
  %v398 = vpow.pop %v397
  %v399 = vmul.f32 %v350, 1.442695
  %v400 = vpow.pop %v399
  %v401 = vmul.f32 %v351, 1.442695
  %v402 = vpow.pop %v401
  %v403 = vmul.f32 %v352, 1.442695
  %v404 = vpow.pop %v403
  %v405 = vmul.f32 %v353, 1.442695
  %v406 = vpow.pop %v405
  %v407 = vmul.f32 %v354, 1.442695
  %v408 = vpow.pop %v407
  %v409 = vmul.f32 %v355, 1.442695
  %v410 = vpow.pop %v409
  %v411 = vmul.f32 %v356, 1.442695
  %v412 = vpow.pop %v411
  %v413 = vmul.f32 %v357, 1.442695
  %v414 = vpow.pop %v413
  %v415 = vmul.f32 %v358, 1.442695
  %v416 = vpow.pop %v415
  %v417 = vmul.f32 %v359, 1.442695
  %v418 = vpow.pop %v417
  %v419 = vmul.f32 %v360, 1.442695
  %v420 = vpow.pop %v419
  %v421 = vmul.f32 %v361, 1.442695
  %v422 = vpow.pop %v421
  %v423 = vmul.f32 %v362, 1.442695
  %v424 = vpow.pop %v423
  %v425 = vmul.f32 %v363, 1.442695
  %v426 = vpow.pop %v425
  %v427 = vmul.f32 %v364, 1.442695
  %v428 = vpow.pop %v427
  %v429 = vmul.f32 %v365, 1.442695
  %v430 = vpow.pop %v429
  %v431 = vmul.f32 %v366, 1.442695
  %v432 = vpow.pop %v431
  %v433 = vmul.f32 %v367, 1.442695
  %v434 = vpow.pop %v433
  %v435 = vmul.f32 %v368, 1.442695
  %v436 = vpow.pop %v435
  %v437 = vmul.f32 %v369, 1.442695
  %v438 = vpow.pop %v437
  %v439 = vmul.f32 %v370, 1.442695
  %v440 = vpow.pop %v439
  %v441 = vmul.f32 %v371, 1.442695
  %v442 = vpow.pop %v441
  %v443 = vmul.f32 %v372, 1.442695
  %v444 = vpow.pop %v443
  %v445 = vmul.f32 %v373, 1.442695
  %v446 = vpow.pop %v445
  %v447 = vmul.f32 %v374, 1.442695
  %v448 = vpow.pop %v447
  %v449 = vmul.f32 %v375, 1.442695
  %v450 = vpow.pop %v449
  %v451 = vmul.f32 %v376, 1.442695
  %v452 = vpow.pop %v451
  %v453 = vadd.f32 %v378, 1.0
  %v454 = vadd.f32 %v380, 1.0
  %v455 = vadd.f32 %v382, 1.0
  %v456 = vadd.f32 %v384, 1.0
  %v457 = vadd.f32 %v386, 1.0
  %v458 = vadd.f32 %v388, 1.0
  %v459 = vadd.f32 %v390, 1.0
  %v460 = vadd.f32 %v392, 1.0
  %v461 = vadd.f32 %v394, 1.0
  %v462 = vadd.f32 %v396, 1.0
  %v463 = vadd.f32 %v398, 1.0
  %v464 = vadd.f32 %v400, 1.0
  %v465 = vadd.f32 %v402, 1.0
  %v466 = vadd.f32 %v404, 1.0
  %v467 = vadd.f32 %v406, 1.0
  %v468 = vadd.f32 %v408, 1.0
  %v469 = vadd.f32 %v410, 1.0
  %v470 = vadd.f32 %v412, 1.0
  %v471 = vadd.f32 %v414, 1.0
  %v472 = vadd.f32 %v416, 1.0
  %v473 = vadd.f32 %v418, 1.0
  %v474 = vadd.f32 %v420, 1.0
  %v475 = vadd.f32 %v422, 1.0
  %v476 = vadd.f32 %v424, 1.0
  %v477 = vadd.f32 %v426, 1.0
  %v478 = vadd.f32 %v428, 1.0
  %v479 = vadd.f32 %v430, 1.0
  %v480 = vadd.f32 %v432, 1.0
  %v481 = vadd.f32 %v434, 1.0
  %v482 = vadd.f32 %v436, 1.0
  %v483 = vadd.f32 %v438, 1.0
  %v484 = vadd.f32 %v440, 1.0
  %v485 = vadd.f32 %v442, 1.0
  %v486 = vadd.f32 %v444, 1.0
  %v487 = vadd.f32 %v446, 1.0
  %v488 = vadd.f32 %v448, 1.0
  %v489 = vadd.f32 %v450, 1.0
  %v490 = vadd.f32 %v452, 1.0
  %v491 = vrcp.pop %v453
  %v492 = vmul.f32 1.0, %v491
  %v493 = vrcp.pop %v454
  %v494 = vmul.f32 1.0, %v493
  %v495 = vrcp.pop %v455
  %v496 = vmul.f32 1.0, %v495
  %v497 = vrcp.pop %v456
  %v498 = vmul.f32 1.0, %v497
  %v499 = vrcp.pop %v457
  %v500 = vmul.f32 1.0, %v499
  %v501 = vrcp.pop %v458
  %v502 = vmul.f32 1.0, %v501
  %v503 = vrcp.pop %v459
  %v504 = vmul.f32 1.0, %v503
  %v505 = vrcp.pop %v460
  %v506 = vmul.f32 1.0, %v505
  %v507 = vrcp.pop %v461
  %v508 = vmul.f32 1.0, %v507
  %v509 = vrcp.pop %v462
  %v510 = vmul.f32 1.0, %v509
  %v511 = vrcp.pop %v463
  %v512 = vmul.f32 1.0, %v511
  %v513 = vrcp.pop %v464
  %v514 = vmul.f32 1.0, %v513
  %v515 = vrcp.pop %v465
  %v516 = vmul.f32 1.0, %v515
  %v517 = vrcp.pop %v466
  %v518 = vmul.f32 1.0, %v517
  %v519 = vrcp.pop %v467
  %v520 = vmul.f32 1.0, %v519
  %v521 = vrcp.pop %v468
  %v522 = vmul.f32 1.0, %v521
  %v523 = vrcp.pop %v469
  %v524 = vmul.f32 1.0, %v523
  %v525 = vrcp.pop %v470
  %v526 = vmul.f32 1.0, %v525
  %v527 = vrcp.pop %v471
  %v528 = vmul.f32 1.0, %v527
  %v529 = vrcp.pop %v472
  %v530 = vmul.f32 1.0, %v529
  %v531 = vrcp.pop %v473
  %v532 = vmul.f32 1.0, %v531
  %v533 = vrcp.pop %v474
  %v534 = vmul.f32 1.0, %v533
  %v535 = vrcp.pop %v475
  %v536 = vmul.f32 1.0, %v535
  %v537 = vrcp.pop %v476
  %v538 = vmul.f32 1.0, %v537
  %v539 = vrcp.pop %v477
  %v540 = vmul.f32 1.0, %v539
  %v541 = vrcp.pop %v478
  %v542 = vmul.f32 1.0, %v541
  %v543 = vrcp.pop %v479
  %v544 = vmul.f32 1.0, %v543
  %v545 = vrcp.pop %v480
  %v546 = vmul.f32 1.0, %v545
  %v547 = vrcp.pop %v481
  %v548 = vmul.f32 1.0, %v547
  %v549 = vrcp.pop %v482
  %v550 = vmul.f32 1.0, %v549
  %v551 = vrcp.pop %v483
  %v552 = vmul.f32 1.0, %v551
  %v553 = vrcp.pop %v484
  %v554 = vmul.f32 1.0, %v553
  %v555 = vrcp.pop %v485
  %v556 = vmul.f32 1.0, %v555
  %v557 = vrcp.pop %v486
  %v558 = vmul.f32 1.0, %v557
  %v559 = vrcp.pop %v487
  %v560 = vmul.f32 1.0, %v559
  %v561 = vrcp.pop %v488
  %v562 = vmul.f32 1.0, %v561
  %v563 = vrcp.pop %v489
  %v564 = vmul.f32 1.0, %v563
  %v565 = vrcp.pop %v490
  %v566 = vmul.f32 1.0, %v565
  %v567 = vmul.f32 %v189, %v492
  %v568 = vmul.f32 %v192, %v494
  %v569 = vmul.f32 %v197, %v496
  %v570 = vmul.f32 %v200, %v498
  %v571 = vmul.f32 %v205, %v500
  %v572 = vmul.f32 %v208, %v502
  %v573 = vmul.f32 %v213, %v504
  %v574 = vmul.f32 %v216, %v506
  %v575 = vmul.f32 %v221, %v508
  %v576 = vmul.f32 %v224, %v510
  %v577 = vmul.f32 %v229, %v512
  %v578 = vmul.f32 %v232, %v514
  %v579 = vmul.f32 %v237, %v516
  %v580 = vmul.f32 %v240, %v518
  %v581 = vmul.f32 %v245, %v520
  %v582 = vmul.f32 %v248, %v522
  %v583 = vmul.f32 %v253, %v524
  %v584 = vmul.f32 %v256, %v526
  %v585 = vmul.f32 %v261, %v528
  %v586 = vmul.f32 %v264, %v530
  %v587 = vmul.f32 %v269, %v532
  %v588 = vmul.f32 %v272, %v534
  %v589 = vmul.f32 %v277, %v536
  %v590 = vmul.f32 %v280, %v538
  %v591 = vmul.f32 %v285, %v540
  %v592 = vmul.f32 %v288, %v542
  %v593 = vmul.f32 %v293, %v544
  %v594 = vmul.f32 %v296, %v546
  %v595 = vmul.f32 %v301, %v548
  %v596 = vmul.f32 %v304, %v550
  %v597 = vmul.f32 %v309, %v552
  %v598 = vmul.f32 %v312, %v554
  %v599 = vmul.f32 %v317, %v556
  %v600 = vmul.f32 %v320, %v558
  %v601 = vmul.f32 %v325, %v560
  %v602 = vmul.f32 %v328, %v562
  %v603 = vmul.f32 %v333, %v564
  %v604 = vmul.f32 %v336, %v566
  %v605 = vlaneseq
  %v606 = vand.u32 %v605, 127
  %v607 = vld [vmem:[%s0] sm:$0xff]
  %v608 = vld [vmem:[%s0 + $0x8] sm:$0xff]
  %v609 = vld [vmem:[%s0 + $0x10] sm:$0xff]
  %v610 = vld [vmem:[%s0 + $0x18] sm:$0xff]
  %v611 = vld [vmem:[%s0 + $0x20] sm:$0xff]
  %v612 = vld [vmem:[%s0 + $0x28] sm:$0xff]
  %v613 = vld [vmem:[%s0 + $0x30] sm:$0xff]
  %v614 = vld [vmem:[%s0 + $0x38] sm:$0xff]
  %v615 = vld [vmem:[%s0 + $0x40] sm:$0xff]
  %v616 = vld [vmem:[%s0 + $0x48] sm:$0xff]
  %v617 = vld [vmem:[%s0 + $0x50] sm:$0xff]
  %v618 = vld [vmem:[%s0 + $0x58] sm:$0xff]
  %v619 = vld [vmem:[%s0 + $0x60] sm:$0xff]
  %v620 = vld [vmem:[%s0 + $0x68] sm:$0xff]
  %v621 = vld [vmem:[%s0 + $0x70] sm:$0xff]
  %v622 = vld [vmem:[%s0 + $0x78] sm:$0xff]
  %v623 = vld [vmem:[%s0 + $0x80] sm:$0xff]
  %v624 = vld [vmem:[%s0 + $0x88] sm:$0xff]
  %v625 = vld [vmem:[%s0 + $0x90] sm:$0xff]
  %v626 = vld [vmem:[%s0 + $0x98] sm:$0xff]
  %v627 = vld [vmem:[%s0 + $0xa0] sm:$0xff]
  %v628 = vld [vmem:[%s0 + $0xa8] sm:$0xff]
  %v629 = vld [vmem:[%s0 + $0xb0] sm:$0xff]
  %v630 = vld [vmem:[%s0 + $0xb8] sm:$0xff]
  %v631 = vld [vmem:[%s0 + $0xc0] sm:$0xff]
  %v632 = vld [vmem:[%s0 + $0xc8] sm:$0xff]
  %v633 = vld [vmem:[%s0 + $0xd0] sm:$0xff]
  %v634 = vld [vmem:[%s0 + $0xd8] sm:$0xff]
  %v635 = vld [vmem:[%s0 + $0xe0] sm:$0xff]
  %v636 = vld [vmem:[%s0 + $0xe8] sm:$0xff]
  %v637 = vld [vmem:[%s0 + $0xf0] sm:$0xff]
  %v638 = vld [vmem:[%s0 + $0xf8] sm:$0xff]
  %v639 = vld [vmem:[%s0 + $0x100] sm:$0xff]
  %v640 = vld [vmem:[%s0 + $0x108] sm:$0xff]
  %v641 = vld [vmem:[%s0 + $0x110] sm:$0xff]
  %v642 = vld [vmem:[%s0 + $0x118] sm:$0xff]
  %v643 = vld [vmem:[%s0 + $0x120] sm:$0xff]
  %v644 = vld [vmem:[%s0 + $0x128] sm:$0xf]
  %645 = vset.pattern.permute.xlu0 0
  %646 = vperm.xlu0 %645, %v607
  %v647 = vpop.permute.xlu0 %646
  %648 = vset.pattern.permute.xlu0 0
  %649 = vperm.xlu0 %648, %v608
  %v650 = vpop.permute.xlu0 %649
  %651 = vset.pattern.permute.xlu0 0
  %652 = vperm.xlu0 %651, %v609
  %v653 = vpop.permute.xlu0 %652
  %654 = vset.pattern.permute.xlu0 0
  %655 = vperm.xlu0 %654, %v610
  %v656 = vpop.permute.xlu0 %655
  %657 = vset.pattern.permute.xlu0 0
  %658 = vperm.xlu0 %657, %v611
  %v659 = vpop.permute.xlu0 %658
  %660 = vset.pattern.permute.xlu0 0
  %661 = vperm.xlu0 %660, %v612
  %v662 = vpop.permute.xlu0 %661
  %663 = vset.pattern.permute.xlu0 0
  %664 = vperm.xlu0 %663, %v613
  %v665 = vpop.permute.xlu0 %664
  %666 = vset.pattern.permute.xlu0 0
  %667 = vperm.xlu0 %666, %v614
  %v668 = vpop.permute.xlu0 %667
  %669 = vset.pattern.permute.xlu0 0
  %670 = vperm.xlu0 %669, %v615
  %v671 = vpop.permute.xlu0 %670
  %672 = vset.pattern.permute.xlu0 0
  %673 = vperm.xlu0 %672, %v616
  %v674 = vpop.permute.xlu0 %673
  %675 = vset.pattern.permute.xlu0 0
  %676 = vperm.xlu0 %675, %v617
  %v677 = vpop.permute.xlu0 %676
  %678 = vset.pattern.permute.xlu0 0
  %679 = vperm.xlu0 %678, %v618
  %v680 = vpop.permute.xlu0 %679
  %681 = vset.pattern.permute.xlu0 0
  %682 = vperm.xlu0 %681, %v619
  %v683 = vpop.permute.xlu0 %682
  %684 = vset.pattern.permute.xlu0 0
  %685 = vperm.xlu0 %684, %v620
  %v686 = vpop.permute.xlu0 %685
  %687 = vset.pattern.permute.xlu0 0
  %688 = vperm.xlu0 %687, %v621
  %v689 = vpop.permute.xlu0 %688
  %690 = vset.pattern.permute.xlu0 0
  %691 = vperm.xlu0 %690, %v622
  %v692 = vpop.permute.xlu0 %691
  %693 = vset.pattern.permute.xlu0 0
  %694 = vperm.xlu0 %693, %v623
  %v695 = vpop.permute.xlu0 %694
  %696 = vset.pattern.permute.xlu0 0
  %697 = vperm.xlu0 %696, %v624
  %v698 = vpop.permute.xlu0 %697
  %699 = vset.pattern.permute.xlu0 0
  %700 = vperm.xlu0 %699, %v625
  %v701 = vpop.permute.xlu0 %700
  %702 = vset.pattern.permute.xlu0 0
  %703 = vperm.xlu0 %702, %v626
  %v704 = vpop.permute.xlu0 %703
  %705 = vset.pattern.permute.xlu0 0
  %706 = vperm.xlu0 %705, %v627
  %v707 = vpop.permute.xlu0 %706
  %708 = vset.pattern.permute.xlu0 0
  %709 = vperm.xlu0 %708, %v628
  %v710 = vpop.permute.xlu0 %709
  %711 = vset.pattern.permute.xlu0 0
  %712 = vperm.xlu0 %711, %v629
  %v713 = vpop.permute.xlu0 %712
  %714 = vset.pattern.permute.xlu0 0
  %715 = vperm.xlu0 %714, %v630
  %v716 = vpop.permute.xlu0 %715
  %717 = vset.pattern.permute.xlu0 0
  %718 = vperm.xlu0 %717, %v631
  %v719 = vpop.permute.xlu0 %718
  %720 = vset.pattern.permute.xlu0 0
  %721 = vperm.xlu0 %720, %v632
  %v722 = vpop.permute.xlu0 %721
  %723 = vset.pattern.permute.xlu0 0
  %724 = vperm.xlu0 %723, %v633
  %v725 = vpop.permute.xlu0 %724
  %726 = vset.pattern.permute.xlu0 0
  %727 = vperm.xlu0 %726, %v634
  %v728 = vpop.permute.xlu0 %727
  %729 = vset.pattern.permute.xlu0 0
  %730 = vperm.xlu0 %729, %v635
  %v731 = vpop.permute.xlu0 %730
  %732 = vset.pattern.permute.xlu0 0
  %733 = vperm.xlu0 %732, %v636
  %v734 = vpop.permute.xlu0 %733
  %735 = vset.pattern.permute.xlu0 0
  %736 = vperm.xlu0 %735, %v637
  %v737 = vpop.permute.xlu0 %736
  %738 = vset.pattern.permute.xlu0 0
  %739 = vperm.xlu0 %738, %v638
  %v740 = vpop.permute.xlu0 %739
  %741 = vset.pattern.permute.xlu0 0
  %742 = vperm.xlu0 %741, %v639
  %v743 = vpop.permute.xlu0 %742
  %744 = vset.pattern.permute.xlu0 0
  %745 = vperm.xlu0 %744, %v640
  %v746 = vpop.permute.xlu0 %745
  %747 = vset.pattern.permute.xlu0 0
  %748 = vperm.xlu0 %747, %v641
  %v749 = vpop.permute.xlu0 %748
  %750 = vset.pattern.permute.xlu0 0
  %751 = vperm.xlu0 %750, %v642
  %v752 = vpop.permute.xlu0 %751
  %753 = vset.pattern.permute.xlu0 0
  %754 = vperm.xlu0 %753, %v643
  %v755 = vpop.permute.xlu0 %754
  %756 = vset.pattern.permute.xlu0 0
  %757 = vperm.xlu0 %756, %v644
  %v758 = vpop.permute.xlu0 %757
  %vm759 = vcmp.eq.s32.totalorder %v647, %v606
  %vm760 = vcmp.eq.s32.totalorder %v650, %v606
  %vm761 = vcmp.eq.s32.totalorder %v653, %v606
  %vm762 = vcmp.eq.s32.totalorder %v656, %v606
  %vm763 = vcmp.eq.s32.totalorder %v659, %v606
  %vm764 = vcmp.eq.s32.totalorder %v662, %v606
  %vm765 = vcmp.eq.s32.totalorder %v665, %v606
  %vm766 = vcmp.eq.s32.totalorder %v668, %v606
  %vm767 = vcmp.eq.s32.totalorder %v671, %v606
  %vm768 = vcmp.eq.s32.totalorder %v674, %v606
  %vm769 = vcmp.eq.s32.totalorder %v677, %v606
  %vm770 = vcmp.eq.s32.totalorder %v680, %v606
  %vm771 = vcmp.eq.s32.totalorder %v683, %v606
  %vm772 = vcmp.eq.s32.totalorder %v686, %v606
  %vm773 = vcmp.eq.s32.totalorder %v689, %v606
  %vm774 = vcmp.eq.s32.totalorder %v692, %v606
  %vm775 = vcmp.eq.s32.totalorder %v695, %v606
  %vm776 = vcmp.eq.s32.totalorder %v698, %v606
  %vm777 = vcmp.eq.s32.totalorder %v701, %v606
  %vm778 = vcmp.eq.s32.totalorder %v704, %v606
  %vm779 = vcmp.eq.s32.totalorder %v707, %v606
  %vm780 = vcmp.eq.s32.totalorder %v710, %v606
  %vm781 = vcmp.eq.s32.totalorder %v713, %v606
  %vm782 = vcmp.eq.s32.totalorder %v716, %v606
  %vm783 = vcmp.eq.s32.totalorder %v719, %v606
  %vm784 = vcmp.eq.s32.totalorder %v722, %v606
  %vm785 = vcmp.eq.s32.totalorder %v725, %v606
  %vm786 = vcmp.eq.s32.totalorder %v728, %v606
  %vm787 = vcmp.eq.s32.totalorder %v731, %v606
  %vm788 = vcmp.eq.s32.totalorder %v734, %v606
  %vm789 = vcmp.eq.s32.totalorder %v737, %v606
  %vm790 = vcmp.eq.s32.totalorder %v740, %v606
  %vm791 = vcmp.eq.s32.totalorder %v743, %v606
  %vm792 = vcmp.eq.s32.totalorder %v746, %v606
  %vm793 = vcmp.eq.s32.totalorder %v749, %v606
  %vm794 = vcmp.eq.s32.totalorder %v752, %v606
  %vm795 = vcmp.eq.s32.totalorder %v755, %v606
  %vm796 = vcmp.eq.s32.totalorder %v758, %v606
  %797 = vset.pattern.permute.xlu0 1
  %798 = vperm.xlu0 %797, %v607
  %v799 = vpop.permute.xlu0 %798
  %800 = vset.pattern.permute.xlu0 1
  %801 = vperm.xlu0 %800, %v608
  %v802 = vpop.permute.xlu0 %801
  %803 = vset.pattern.permute.xlu0 1
  %804 = vperm.xlu0 %803, %v609
  %v805 = vpop.permute.xlu0 %804
  %806 = vset.pattern.permute.xlu0 1
  %807 = vperm.xlu0 %806, %v610
  %v808 = vpop.permute.xlu0 %807
  %809 = vset.pattern.permute.xlu0 1
  %810 = vperm.xlu0 %809, %v611
  %v811 = vpop.permute.xlu0 %810
  %812 = vset.pattern.permute.xlu0 1
  %813 = vperm.xlu0 %812, %v612
  %v814 = vpop.permute.xlu0 %813
  %815 = vset.pattern.permute.xlu0 1
  %816 = vperm.xlu0 %815, %v613
  %v817 = vpop.permute.xlu0 %816
  %818 = vset.pattern.permute.xlu0 1
  %819 = vperm.xlu0 %818, %v614
  %v820 = vpop.permute.xlu0 %819
  %821 = vset.pattern.permute.xlu0 1
  %822 = vperm.xlu0 %821, %v615
  %v823 = vpop.permute.xlu0 %822
  %824 = vset.pattern.permute.xlu0 1
  %825 = vperm.xlu0 %824, %v616
  %v826 = vpop.permute.xlu0 %825
  %827 = vset.pattern.permute.xlu0 1
  %828 = vperm.xlu0 %827, %v617
  %v829 = vpop.permute.xlu0 %828
  %830 = vset.pattern.permute.xlu0 1
  %831 = vperm.xlu0 %830, %v618
  %v832 = vpop.permute.xlu0 %831
  %833 = vset.pattern.permute.xlu0 1
  %834 = vperm.xlu0 %833, %v619
  %v835 = vpop.permute.xlu0 %834
  %836 = vset.pattern.permute.xlu0 1
  %837 = vperm.xlu0 %836, %v620
  %v838 = vpop.permute.xlu0 %837
  %839 = vset.pattern.permute.xlu0 1
  %840 = vperm.xlu0 %839, %v621
  %v841 = vpop.permute.xlu0 %840
  %842 = vset.pattern.permute.xlu0 1
  %843 = vperm.xlu0 %842, %v622
  %v844 = vpop.permute.xlu0 %843
  %845 = vset.pattern.permute.xlu0 1
  %846 = vperm.xlu0 %845, %v623
  %v847 = vpop.permute.xlu0 %846
  %848 = vset.pattern.permute.xlu0 1
  %849 = vperm.xlu0 %848, %v624
  %v850 = vpop.permute.xlu0 %849
  %851 = vset.pattern.permute.xlu0 1
  %852 = vperm.xlu0 %851, %v625
  %v853 = vpop.permute.xlu0 %852
  %854 = vset.pattern.permute.xlu0 1
  %855 = vperm.xlu0 %854, %v626
  %v856 = vpop.permute.xlu0 %855
  %857 = vset.pattern.permute.xlu0 1
  %858 = vperm.xlu0 %857, %v627
  %v859 = vpop.permute.xlu0 %858
  %860 = vset.pattern.permute.xlu0 1
  %861 = vperm.xlu0 %860, %v628
  %v862 = vpop.permute.xlu0 %861
  %863 = vset.pattern.permute.xlu0 1
  %864 = vperm.xlu0 %863, %v629
  %v865 = vpop.permute.xlu0 %864
  %866 = vset.pattern.permute.xlu0 1
  %867 = vperm.xlu0 %866, %v630
  %v868 = vpop.permute.xlu0 %867
  %869 = vset.pattern.permute.xlu0 1
  %870 = vperm.xlu0 %869, %v631
  %v871 = vpop.permute.xlu0 %870
  %872 = vset.pattern.permute.xlu0 1
  %873 = vperm.xlu0 %872, %v632
  %v874 = vpop.permute.xlu0 %873
  %875 = vset.pattern.permute.xlu0 1
  %876 = vperm.xlu0 %875, %v633
  %v877 = vpop.permute.xlu0 %876
  %878 = vset.pattern.permute.xlu0 1
  %879 = vperm.xlu0 %878, %v634
  %v880 = vpop.permute.xlu0 %879
  %881 = vset.pattern.permute.xlu0 1
  %882 = vperm.xlu0 %881, %v635
  %v883 = vpop.permute.xlu0 %882
  %884 = vset.pattern.permute.xlu0 1
  %885 = vperm.xlu0 %884, %v636
  %v886 = vpop.permute.xlu0 %885
  %887 = vset.pattern.permute.xlu0 1
  %888 = vperm.xlu0 %887, %v637
  %v889 = vpop.permute.xlu0 %888
  %890 = vset.pattern.permute.xlu0 1
  %891 = vperm.xlu0 %890, %v638
  %v892 = vpop.permute.xlu0 %891
  %893 = vset.pattern.permute.xlu0 1
  %894 = vperm.xlu0 %893, %v639
  %v895 = vpop.permute.xlu0 %894
  %896 = vset.pattern.permute.xlu0 1
  %897 = vperm.xlu0 %896, %v640
  %v898 = vpop.permute.xlu0 %897
  %899 = vset.pattern.permute.xlu0 1
  %900 = vperm.xlu0 %899, %v641
  %v901 = vpop.permute.xlu0 %900
  %902 = vset.pattern.permute.xlu0 1
  %903 = vperm.xlu0 %902, %v642
  %v904 = vpop.permute.xlu0 %903
  %905 = vset.pattern.permute.xlu0 1
  %906 = vperm.xlu0 %905, %v643
  %v907 = vpop.permute.xlu0 %906
  %908 = vset.pattern.permute.xlu0 1
  %909 = vperm.xlu0 %908, %v644
  %v910 = vpop.permute.xlu0 %909
  %vm911 = vcmp.eq.s32.totalorder %v799, %v606
  %vm912 = vcmp.eq.s32.totalorder %v802, %v606
  %vm913 = vcmp.eq.s32.totalorder %v805, %v606
  %vm914 = vcmp.eq.s32.totalorder %v808, %v606
  %vm915 = vcmp.eq.s32.totalorder %v811, %v606
  %vm916 = vcmp.eq.s32.totalorder %v814, %v606
  %vm917 = vcmp.eq.s32.totalorder %v817, %v606
  %vm918 = vcmp.eq.s32.totalorder %v820, %v606
  %vm919 = vcmp.eq.s32.totalorder %v823, %v606
  %vm920 = vcmp.eq.s32.totalorder %v826, %v606
  %vm921 = vcmp.eq.s32.totalorder %v829, %v606
  %vm922 = vcmp.eq.s32.totalorder %v832, %v606
  %vm923 = vcmp.eq.s32.totalorder %v835, %v606
  %vm924 = vcmp.eq.s32.totalorder %v838, %v606
  %vm925 = vcmp.eq.s32.totalorder %v841, %v606
  %vm926 = vcmp.eq.s32.totalorder %v844, %v606
  %vm927 = vcmp.eq.s32.totalorder %v847, %v606
  %vm928 = vcmp.eq.s32.totalorder %v850, %v606
  %vm929 = vcmp.eq.s32.totalorder %v853, %v606
  %vm930 = vcmp.eq.s32.totalorder %v856, %v606
  %vm931 = vcmp.eq.s32.totalorder %v859, %v606
  %vm932 = vcmp.eq.s32.totalorder %v862, %v606
  %vm933 = vcmp.eq.s32.totalorder %v865, %v606
  %vm934 = vcmp.eq.s32.totalorder %v868, %v606
  %vm935 = vcmp.eq.s32.totalorder %v871, %v606
  %vm936 = vcmp.eq.s32.totalorder %v874, %v606
  %vm937 = vcmp.eq.s32.totalorder %v877, %v606
  %vm938 = vcmp.eq.s32.totalorder %v880, %v606
  %vm939 = vcmp.eq.s32.totalorder %v883, %v606
  %vm940 = vcmp.eq.s32.totalorder %v886, %v606
  %vm941 = vcmp.eq.s32.totalorder %v889, %v606
  %vm942 = vcmp.eq.s32.totalorder %v892, %v606
  %vm943 = vcmp.eq.s32.totalorder %v895, %v606
  %vm944 = vcmp.eq.s32.totalorder %v898, %v606
  %vm945 = vcmp.eq.s32.totalorder %v901, %v606
  %vm946 = vcmp.eq.s32.totalorder %v904, %v606
  %vm947 = vcmp.eq.s32.totalorder %v907, %v606
  %vm948 = vcmp.eq.s32.totalorder %v910, %v606
  %vm949 = vmor %vm759, %vm911
  %vm950 = vmor %vm760, %vm912
  %vm951 = vmor %vm761, %vm913
  %vm952 = vmor %vm762, %vm914
  %vm953 = vmor %vm763, %vm915
  %vm954 = vmor %vm764, %vm916
  %vm955 = vmor %vm765, %vm917
  %vm956 = vmor %vm766, %vm918
  %vm957 = vmor %vm767, %vm919
  %vm958 = vmor %vm768, %vm920
  %vm959 = vmor %vm769, %vm921
  %vm960 = vmor %vm770, %vm922
  %vm961 = vmor %vm771, %vm923
  %vm962 = vmor %vm772, %vm924
  %vm963 = vmor %vm773, %vm925
  %vm964 = vmor %vm774, %vm926
  %vm965 = vmor %vm775, %vm927
  %vm966 = vmor %vm776, %vm928
  %vm967 = vmor %vm777, %vm929
  %vm968 = vmor %vm778, %vm930
  %vm969 = vmor %vm779, %vm931
  %vm970 = vmor %vm780, %vm932
  %vm971 = vmor %vm781, %vm933
  %vm972 = vmor %vm782, %vm934
  %vm973 = vmor %vm783, %vm935
  %vm974 = vmor %vm784, %vm936
  %vm975 = vmor %vm785, %vm937
  %vm976 = vmor %vm786, %vm938
  %vm977 = vmor %vm787, %vm939
  %vm978 = vmor %vm788, %vm940
  %vm979 = vmor %vm789, %vm941
  %vm980 = vmor %vm790, %vm942
  %vm981 = vmor %vm791, %vm943
  %vm982 = vmor %vm792, %vm944
  %vm983 = vmor %vm793, %vm945
  %vm984 = vmor %vm794, %vm946
  %vm985 = vmor %vm795, %vm947
  %vm986 = vmor %vm796, %vm948
  %v987 = vsel %vm949, 1, 0
  %v988 = vsel %vm950, 1, 0
  %v989 = vsel %vm951, 1, 0
  %v990 = vsel %vm952, 1, 0
  %v991 = vsel %vm953, 1, 0
  %v992 = vsel %vm954, 1, 0
  %v993 = vsel %vm955, 1, 0
  %v994 = vsel %vm956, 1, 0
  %v995 = vsel %vm957, 1, 0
  %v996 = vsel %vm958, 1, 0
  %v997 = vsel %vm959, 1, 0
  %v998 = vsel %vm960, 1, 0
  %v999 = vsel %vm961, 1, 0
  %v1000 = vsel %vm962, 1, 0
  %v1001 = vsel %vm963, 1, 0
  %v1002 = vsel %vm964, 1, 0
  %v1003 = vsel %vm965, 1, 0
  %v1004 = vsel %vm966, 1, 0
  %v1005 = vsel %vm967, 1, 0
  %v1006 = vsel %vm968, 1, 0
  %v1007 = vsel %vm969, 1, 0
  %v1008 = vsel %vm970, 1, 0
  %v1009 = vsel %vm971, 1, 0
  %v1010 = vsel %vm972, 1, 0
  %v1011 = vsel %vm973, 1, 0
  %v1012 = vsel %vm974, 1, 0
  %v1013 = vsel %vm975, 1, 0
  %v1014 = vsel %vm976, 1, 0
  %v1015 = vsel %vm977, 1, 0
  %v1016 = vsel %vm978, 1, 0
  %v1017 = vsel %vm979, 1, 0
  %v1018 = vsel %vm980, 1, 0
  %v1019 = vsel %vm981, 1, 0
  %v1020 = vsel %vm982, 1, 0
  %v1021 = vsel %vm983, 1, 0
  %v1022 = vsel %vm984, 1, 0
  %v1023 = vsel %vm985, 1, 0
  %v1024 = vsel %vm986, 1, 0
  %v1025 = vcvt.s32.f32 %v987
  %v1026 = vcvt.s32.f32 %v988
  %v1027 = vcvt.s32.f32 %v989
  %v1028 = vcvt.s32.f32 %v990
  %v1029 = vcvt.s32.f32 %v991
  %v1030 = vcvt.s32.f32 %v992
  %v1031 = vcvt.s32.f32 %v993
  %v1032 = vcvt.s32.f32 %v994
  %v1033 = vcvt.s32.f32 %v995
  %v1034 = vcvt.s32.f32 %v996
  %v1035 = vcvt.s32.f32 %v997
  %v1036 = vcvt.s32.f32 %v998
  %v1037 = vcvt.s32.f32 %v999
  %v1038 = vcvt.s32.f32 %v1000
  %v1039 = vcvt.s32.f32 %v1001
  %v1040 = vcvt.s32.f32 %v1002
  %v1041 = vcvt.s32.f32 %v1003
  %v1042 = vcvt.s32.f32 %v1004
  %v1043 = vcvt.s32.f32 %v1005
  %v1044 = vcvt.s32.f32 %v1006
  %v1045 = vcvt.s32.f32 %v1007
  %v1046 = vcvt.s32.f32 %v1008
  %v1047 = vcvt.s32.f32 %v1009
  %v1048 = vcvt.s32.f32 %v1010
  %v1049 = vcvt.s32.f32 %v1011
  %v1050 = vcvt.s32.f32 %v1012
  %v1051 = vcvt.s32.f32 %v1013
  %v1052 = vcvt.s32.f32 %v1014
  %v1053 = vcvt.s32.f32 %v1015
  %v1054 = vcvt.s32.f32 %v1016
  %v1055 = vcvt.s32.f32 %v1017
  %v1056 = vcvt.s32.f32 %v1018
  %v1057 = vcvt.s32.f32 %v1019
  %v1058 = vcvt.s32.f32 %v1020
  %v1059 = vcvt.s32.f32 %v1021
  %v1060 = vcvt.s32.f32 %v1022
  %v1061 = vcvt.s32.f32 %v1023
  %v1062 = vcvt.s32.f32 %v1024
  %v1063 = vpack.c.bf16 %v1026, %v1025
  %v1064 = vpack.c.bf16 %v1028, %v1027
  %v1065 = vpack.c.bf16 %v1030, %v1029
  %v1066 = vpack.c.bf16 %v1032, %v1031
  %v1067 = vpack.c.bf16 %v1034, %v1033
  %v1068 = vpack.c.bf16 %v1036, %v1035
  %v1069 = vpack.c.bf16 %v1038, %v1037
  %v1070 = vpack.c.bf16 %v1040, %v1039
  %v1071 = vpack.c.bf16 %v1042, %v1041
  %v1072 = vpack.c.bf16 %v1044, %v1043
  %v1073 = vpack.c.bf16 %v1046, %v1045
  %v1074 = vpack.c.bf16 %v1048, %v1047
  %v1075 = vpack.c.bf16 %v1050, %v1049
  %v1076 = vpack.c.bf16 %v1052, %v1051
  %v1077 = vpack.c.bf16 %v1054, %v1053
  %v1078 = vpack.c.bf16 %v1056, %v1055
  %v1079 = vpack.c.bf16 %v1058, %v1057
  %v1080 = vpack.c.bf16 %v1060, %v1059
  %v1081 = vpack.c.bf16 %v1062, %v1061
  %v1082 = vld [vmem:[%s2] sm:$0xf]
  %v1083 = vld [vmem:[%s2 + $0x4] sm:$0xf]
  %v1084 = vpack.c.bf16 %v568, %v567
  %v1085 = vpack.c.bf16 %v570, %v569
  %v1086 = vpack.c.bf16 %v572, %v571
  %v1087 = vpack.c.bf16 %v574, %v573
  %v1088 = vpack.c.bf16 %v576, %v575
  %v1089 = vpack.c.bf16 %v578, %v577
  %v1090 = vpack.c.bf16 %v580, %v579
  %v1091 = vpack.c.bf16 %v582, %v581
  %v1092 = vpack.c.bf16 %v584, %v583
  %v1093 = vpack.c.bf16 %v586, %v585
  %v1094 = vpack.c.bf16 %v588, %v587
  %v1095 = vpack.c.bf16 %v590, %v589
  %v1096 = vpack.c.bf16 %v592, %v591
  %v1097 = vpack.c.bf16 %v594, %v593
  %v1098 = vpack.c.bf16 %v596, %v595
  %v1099 = vpack.c.bf16 %v598, %v597
  %v1100 = vpack.c.bf16 %v600, %v599
  %v1101 = vpack.c.bf16 %v602, %v601
  %v1102 = vpack.c.bf16 %v604, %v603
  %v1103 = vld [vmem:[%s5] sm:$0xf]
  %v1104 = vld [vmem:[%s5 + $0x4] sm:$0xf]
  %v1105 = vld [vmem:[%s5 + $0x8] sm:$0xf]
  %v1106 = vld [vmem:[%s5 + $0xc] sm:$0xf]
  %v1111 = vunpack.c.l.b16 %v1103
  %v1112 = vunpack.c.l.b16 %v1104
  %v1113 = vunpack.c.l.b16 %v1105
  %v1114 = vunpack.c.l.b16 %v1106
  %v1115 = vpack.c.b16 %v1112, %v1111
  %v1116 = vpack.c.b16 %v1114, %v1113
  %vm1119 = vcmask 261120
  %v1121 = vsel %vm1119, %v1084, 0
  %v1124 = vsel %vm1119, %v1085, 0
  %v1127 = vsel %vm1119, %v1086, 0
  %v1130 = vsel %vm1119, %v1087, 0
  %v1133 = vsel %vm1119, %v1088, 0
  %v1136 = vsel %vm1119, %v1089, 0
  %v1139 = vsel %vm1119, %v1090, 0
  %v1142 = vsel %vm1119, %v1091, 0
  %v1145 = vsel %vm1119, %v1092, 0
  %v1148 = vsel %vm1119, %v1093, 0
  %v1151 = vsel %vm1119, %v1094, 0
  %v1154 = vsel %vm1119, %v1095, 0
  %v1157 = vsel %vm1119, %v1096, 0
  %v1160 = vsel %vm1119, %v1097, 0
  %v1163 = vsel %vm1119, %v1098, 0
  %v1166 = vsel %vm1119, %v1099, 0
  %v1169 = vsel %vm1119, %v1100, 0
  %v1172 = vsel %vm1119, %v1101, 0
  %v1175 = vsel %vm1119, %v1102, 0
  %1177 = vmatprep.subr.bf16.mxu0 0
  %1178 = vmatpush1.bf16.msra.mxu0 %v1115
  %1179 = vmatprep.subr.bf16.mxu0 0
  %1180 = vmatpush1.bf16.msra.mxu0 %v1116
  %1181 = vmatprep.subr.bf16.mxu0 0
  %1182 = vmatpush1.bf16.msra.mxu0 0
  %1183 = vmatprep.subr.bf16.mxu0 0
  %1184 = vmatpush1.bf16.msra.mxu0 0
  %1185 = vmatprep.subr.bf16.mxu0 0
  %1186 = vmatpush1.bf16.msra.mxu0 0
  %1187 = vmatprep.subr.bf16.mxu0 0
  %1188 = vmatpush1.bf16.msra.mxu0 0
  %1189 = vmatprep.subr.bf16.mxu0 0
  %1190 = vmatpush1.bf16.msra.mxu0 0
  %1191 = vmatprep.subr.bf16.mxu0 0
  %1192 = vmatpush1.bf16.msra.mxu0 0
  %1193 = vmatprep.subr.bf16.mxu0 0
  %1194 = vmatpush1.bf16.msra.mxu0 0
  %1195 = vmatprep.subr.bf16.mxu0 0
  %1196 = vmatpush1.bf16.msra.mxu0 0
  %1197 = vmatprep.subr.bf16.mxu0 0
  %1198 = vmatpush1.bf16.msra.mxu0 0
  %1199 = vmatprep.subr.bf16.mxu0 0
  %1200 = vmatpush1.bf16.msra.mxu0 0
  %1201 = vmatprep.subr.bf16.mxu0 0
  %1202 = vmatpush1.bf16.msra.mxu0 0
  %1203 = vmatprep.subr.bf16.mxu0 0
  %1204 = vmatpush1.bf16.msra.mxu0 0
  %1205 = vmatprep.subr.bf16.mxu0 0
  %1206 = vmatpush1.bf16.msra.mxu0 0
  %1207 = vmatprep.subr.bf16.mxu0 0
  %1208 = vmatpush1.bf16.msra.mxu0 0
  %1209 = vmatprep.mubr.bf16.mxu0 0
  %1210 = vmatmul.mubr.bf16.gmra.mrb[0].mxu0 %v1121
  %v1211 = vpop.f32.mrb[0].mxu0
  %v1212 = vadd.f32 0.0, %v1211
  %v1213 = vpop.f32.mrb[0].mxu0
  %v1214 = vpop.f32.mrb[0].mxu0
  %v1215 = vadd.f32 0.0, %v1214
  %v1216 = vpop.f32.mrb[0].mxu0
  %1217 = vmatprep.mubr.bf16.mxu0 0
  %1218 = vmatmul.mubr.bf16.gmra.mrb[0].mxu0 %v1124
  %v1219 = vpop.f32.mrb[0].mxu0
  %v1220 = vadd.f32 0.0, %v1219
  %v1221 = vpop.f32.mrb[0].mxu0
  %v1222 = vpop.f32.mrb[0].mxu0
  %v1223 = vadd.f32 0.0, %v1222
  %v1224 = vpop.f32.mrb[0].mxu0
  %1225 = vmatprep.mubr.bf16.mxu0 0
  %1226 = vmatmul.mubr.bf16.gmra.mrb[0].mxu0 %v1127
  %v1227 = vpop.f32.mrb[0].mxu0
  %v1228 = vadd.f32 0.0, %v1227
  %v1229 = vpop.f32.mrb[0].mxu0
  %v1230 = vpop.f32.mrb[0].mxu0
  %v1231 = vadd.f32 0.0, %v1230
  %v1232 = vpop.f32.mrb[0].mxu0
  %1233 = vmatprep.mubr.bf16.mxu0 0
  %1234 = vmatmul.mubr.bf16.gmra.mrb[0].mxu0 %v1130
  %v1235 = vpop.f32.mrb[0].mxu0
  %v1236 = vadd.f32 0.0, %v1235
  %v1237 = vpop.f32.mrb[0].mxu0
  %v1238 = vpop.f32.mrb[0].mxu0
  %v1239 = vadd.f32 0.0, %v1238
  %v1240 = vpop.f32.mrb[0].mxu0
  %1241 = vmatprep.mubr.bf16.mxu0 0
  %1242 = vmatmul.mubr.bf16.gmra.mrb[0].mxu0 %v1133
  %v1243 = vpop.f32.mrb[0].mxu0
  %v1244 = vadd.f32 0.0, %v1243
  %v1245 = vpop.f32.mrb[0].mxu0
  %v1246 = vpop.f32.mrb[0].mxu0
  %v1247 = vadd.f32 0.0, %v1246
  %v1248 = vpop.f32.mrb[0].mxu0
  %1249 = vmatprep.mubr.bf16.mxu0 0
  %1250 = vmatmul.mubr.bf16.gmra.mrb[0].mxu0 %v1136
  %v1251 = vpop.f32.mrb[0].mxu0
  %v1252 = vadd.f32 0.0, %v1251
  %v1253 = vpop.f32.mrb[0].mxu0
  %v1254 = vpop.f32.mrb[0].mxu0
  %v1255 = vadd.f32 0.0, %v1254
  %v1256 = vpop.f32.mrb[0].mxu0
  %1257 = vmatprep.mubr.bf16.mxu0 0
  %1258 = vmatmul.mubr.bf16.gmra.mrb[0].mxu0 %v1139
  %v1259 = vpop.f32.mrb[0].mxu0
  %v1260 = vadd.f32 0.0, %v1259
  %v1261 = vpop.f32.mrb[0].mxu0
  %v1262 = vpop.f32.mrb[0].mxu0
  %v1263 = vadd.f32 0.0, %v1262
  %v1264 = vpop.f32.mrb[0].mxu0
  %1265 = vmatprep.mubr.bf16.mxu0 0
  %1266 = vmatmul.mubr.bf16.gmra.mrb[0].mxu0 %v1142
  %v1267 = vpop.f32.mrb[0].mxu0
  %v1268 = vadd.f32 0.0, %v1267
  %v1269 = vpop.f32.mrb[0].mxu0
  %v1270 = vpop.f32.mrb[0].mxu0
  %v1271 = vadd.f32 0.0, %v1270
  %v1272 = vpop.f32.mrb[0].mxu0
  %1273 = vmatprep.mubr.bf16.mxu0 0
  %1274 = vmatmul.mubr.bf16.gmra.mrb[0].mxu0 %v1145
  %v1275 = vpop.f32.mrb[0].mxu0
  %v1276 = vadd.f32 0.0, %v1275
  %v1277 = vpop.f32.mrb[0].mxu0
  %v1278 = vpop.f32.mrb[0].mxu0
  %v1279 = vadd.f32 0.0, %v1278
  %v1280 = vpop.f32.mrb[0].mxu0
  %1281 = vmatprep.mubr.bf16.mxu0 0
  %1282 = vmatmul.mubr.bf16.gmra.mrb[0].mxu0 %v1148
  %v1283 = vpop.f32.mrb[0].mxu0
  %v1284 = vadd.f32 0.0, %v1283
  %v1285 = vpop.f32.mrb[0].mxu0
  %v1286 = vpop.f32.mrb[0].mxu0
  %v1287 = vadd.f32 0.0, %v1286
  %v1288 = vpop.f32.mrb[0].mxu0
  %1289 = vmatprep.mubr.bf16.mxu0 0
  %1290 = vmatmul.mubr.bf16.gmra.mrb[0].mxu0 %v1151
  %v1291 = vpop.f32.mrb[0].mxu0
  %v1292 = vadd.f32 0.0, %v1291
  %v1293 = vpop.f32.mrb[0].mxu0
  %v1294 = vpop.f32.mrb[0].mxu0
  %v1295 = vadd.f32 0.0, %v1294
  %v1296 = vpop.f32.mrb[0].mxu0
  %1297 = vmatprep.mubr.bf16.mxu0 0
  %1298 = vmatmul.mubr.bf16.gmra.mrb[0].mxu0 %v1154
  %v1299 = vpop.f32.mrb[0].mxu0
  %v1300 = vadd.f32 0.0, %v1299
  %v1301 = vpop.f32.mrb[0].mxu0
  %v1302 = vpop.f32.mrb[0].mxu0
  %v1303 = vadd.f32 0.0, %v1302
  %v1304 = vpop.f32.mrb[0].mxu0
  %1305 = vmatprep.mubr.bf16.mxu0 0
  %1306 = vmatmul.mubr.bf16.gmra.mrb[0].mxu0 %v1157
  %v1307 = vpop.f32.mrb[0].mxu0
  %v1308 = vadd.f32 0.0, %v1307
  %v1309 = vpop.f32.mrb[0].mxu0
  %v1310 = vpop.f32.mrb[0].mxu0
  %v1311 = vadd.f32 0.0, %v1310
  %v1312 = vpop.f32.mrb[0].mxu0
  %1313 = vmatprep.mubr.bf16.mxu0 0
  %1314 = vmatmul.mubr.bf16.gmra.mrb[0].mxu0 %v1160
  %v1315 = vpop.f32.mrb[0].mxu0
  %v1316 = vadd.f32 0.0, %v1315
  %v1317 = vpop.f32.mrb[0].mxu0
  %v1318 = vpop.f32.mrb[0].mxu0
  %v1319 = vadd.f32 0.0, %v1318
  %v1320 = vpop.f32.mrb[0].mxu0
  %1321 = vmatprep.mubr.bf16.mxu0 0
  %1322 = vmatmul.mubr.bf16.gmra.mrb[0].mxu0 %v1163
  %v1323 = vpop.f32.mrb[0].mxu0
  %v1324 = vadd.f32 0.0, %v1323
  %v1325 = vpop.f32.mrb[0].mxu0
  %v1326 = vpop.f32.mrb[0].mxu0
  %v1327 = vadd.f32 0.0, %v1326
  %v1328 = vpop.f32.mrb[0].mxu0
  %1329 = vmatprep.mubr.bf16.mxu0 0
  %1330 = vmatmul.mubr.bf16.gmra.mrb[0].mxu0 %v1166
  %v1331 = vpop.f32.mrb[0].mxu0
  %v1332 = vadd.f32 0.0, %v1331
  %v1333 = vpop.f32.mrb[0].mxu0
  %v1334 = vpop.f32.mrb[0].mxu0
  %v1335 = vadd.f32 0.0, %v1334
  %v1336 = vpop.f32.mrb[0].mxu0
  %1337 = vmatprep.mubr.bf16.mxu0 0
  %1338 = vmatmul.mubr.bf16.gmra.mrb[0].mxu0 %v1169
  %v1339 = vpop.f32.mrb[0].mxu0
  %v1340 = vadd.f32 0.0, %v1339
  %v1341 = vpop.f32.mrb[0].mxu0
  %v1342 = vpop.f32.mrb[0].mxu0
  %v1343 = vadd.f32 0.0, %v1342
  %v1344 = vpop.f32.mrb[0].mxu0
  %1345 = vmatprep.mubr.bf16.mxu0 0
  %1346 = vmatmul.mubr.bf16.gmra.mrb[0].mxu0 %v1172
  %v1347 = vpop.f32.mrb[0].mxu0
  %v1348 = vadd.f32 0.0, %v1347
  %v1349 = vpop.f32.mrb[0].mxu0
  %v1350 = vpop.f32.mrb[0].mxu0
  %v1351 = vadd.f32 0.0, %v1350
  %v1352 = vpop.f32.mrb[0].mxu0
  %1353 = vmatprep.mubr.bf16.mxu0 0
  %1354 = vmatmul.mubr.bf16.gmra.mrb[0].mxu0 %v1175
  %v1355 = vpop.f32.mrb[0].mxu0
  %v1356 = vadd.f32 0.0, %v1355
  %v1357 = vpop.f32.mrb[0].mxu0
  %v1358 = vpop.f32.mrb[0].mxu0
  %v1359 = vadd.f32 0.0, %v1358
  %v1360 = vpop.f32.mrb[0].mxu0
  %1361 = vdwg.mxu0
  %v1364 = vunpack.c.l.b16 %v1082
  %v1365 = vunpack.c.l.b16 %v1083
  %v1366 = vpack.c.b16 %v1365, %v1364
  %vm1368 = vcmask 130048
  %v1370 = vsel %vm1368, %v1063, 0
  %v1373 = vsel %vm1368, %v1064, 0
  %v1376 = vsel %vm1368, %v1065, 0
  %v1379 = vsel %vm1368, %v1066, 0
  %v1382 = vsel %vm1368, %v1067, 0
  %v1385 = vsel %vm1368, %v1068, 0
  %v1388 = vsel %vm1368, %v1069, 0
  %v1391 = vsel %vm1368, %v1070, 0
  %v1394 = vsel %vm1368, %v1071, 0
  %v1397 = vsel %vm1368, %v1072, 0
  %v1400 = vsel %vm1368, %v1073, 0
  %v1403 = vsel %vm1368, %v1074, 0
  %v1406 = vsel %vm1368, %v1075, 0
  %v1409 = vsel %vm1368, %v1076, 0
  %v1412 = vsel %vm1368, %v1077, 0
  %v1415 = vsel %vm1368, %v1078, 0
  %v1418 = vsel %vm1368, %v1079, 0
  %v1421 = vsel %vm1368, %v1080, 0
  %v1424 = vsel %vm1368, %v1081, 0
  %1426 = vmatprep.subr.bf16.mxu0 0
  %1427 = vmatpush1.bf16.msra.mxu0 %v1366
  %1428 = vmatprep.subr.bf16.mxu0 0
  %1429 = vmatpush1.bf16.msra.mxu0 0
  %1430 = vmatprep.subr.bf16.mxu0 0
  %1431 = vmatpush1.bf16.msra.mxu0 0
  %1432 = vmatprep.subr.bf16.mxu0 0
  %1433 = vmatpush1.bf16.msra.mxu0 0
  %1434 = vmatprep.subr.bf16.mxu0 0
  %1435 = vmatpush1.bf16.msra.mxu0 0
  %1436 = vmatprep.subr.bf16.mxu0 0
  %1437 = vmatpush1.bf16.msra.mxu0 0
  %1438 = vmatprep.subr.bf16.mxu0 0
  %1439 = vmatpush1.bf16.msra.mxu0 0
  %1440 = vmatprep.subr.bf16.mxu0 0
  %1441 = vmatpush1.bf16.msra.mxu0 0
  %1442 = vmatprep.subr.bf16.mxu0 0
  %1443 = vmatpush1.bf16.msra.mxu0 0
  %1444 = vmatprep.subr.bf16.mxu0 0
  %1445 = vmatpush1.bf16.msra.mxu0 0
  %1446 = vmatprep.subr.bf16.mxu0 0
  %1447 = vmatpush1.bf16.msra.mxu0 0
  %1448 = vmatprep.subr.bf16.mxu0 0
  %1449 = vmatpush1.bf16.msra.mxu0 0
  %1450 = vmatprep.subr.bf16.mxu0 0
  %1451 = vmatpush1.bf16.msra.mxu0 0
  %1452 = vmatprep.subr.bf16.mxu0 0
  %1453 = vmatpush1.bf16.msra.mxu0 0
  %1454 = vmatprep.subr.bf16.mxu0 0
  %1455 = vmatpush1.bf16.msra.mxu0 0
  %1456 = vmatprep.subr.bf16.mxu0 0
  %1457 = vmatpush1.bf16.msra.mxu0 0
  %1458 = vmatprep.mubr.bf16.mxu0 0
  %1459 = vmatmul.mubr.bf16.gmra.mrb[0].mxu0 %v1370
  %v1460 = vpop.f32.mrb[0].mxu0
  %v1461 = vadd.f32 %v1212, %v1460
  %v1462 = vpop.f32.mrb[0].mxu0
  %v1463 = vpop.f32.mrb[0].mxu0
  %v1464 = vadd.f32 %v1215, %v1463
  %v1465 = vpop.f32.mrb[0].mxu0
  %1466 = vmatprep.mubr.bf16.mxu0 0
  %1467 = vmatmul.mubr.bf16.gmra.mrb[0].mxu0 %v1373
  %v1468 = vpop.f32.mrb[0].mxu0
  %v1469 = vadd.f32 %v1220, %v1468
  %v1470 = vpop.f32.mrb[0].mxu0
  %v1471 = vpop.f32.mrb[0].mxu0
  %v1472 = vadd.f32 %v1223, %v1471
  %v1473 = vpop.f32.mrb[0].mxu0
  %1474 = vmatprep.mubr.bf16.mxu0 0
  %1475 = vmatmul.mubr.bf16.gmra.mrb[0].mxu0 %v1376
  %v1476 = vpop.f32.mrb[0].mxu0
  %v1477 = vadd.f32 %v1228, %v1476
  %v1478 = vpop.f32.mrb[0].mxu0
  %v1479 = vpop.f32.mrb[0].mxu0
  %v1480 = vadd.f32 %v1231, %v1479
  %v1481 = vpop.f32.mrb[0].mxu0
  %1482 = vmatprep.mubr.bf16.mxu0 0
  %1483 = vmatmul.mubr.bf16.gmra.mrb[0].mxu0 %v1379
  %v1484 = vpop.f32.mrb[0].mxu0
  %v1485 = vadd.f32 %v1236, %v1484
  %v1486 = vpop.f32.mrb[0].mxu0
  %v1487 = vpop.f32.mrb[0].mxu0
  %v1488 = vadd.f32 %v1239, %v1487
  %v1489 = vpop.f32.mrb[0].mxu0
  %1490 = vmatprep.mubr.bf16.mxu0 0
  %1491 = vmatmul.mubr.bf16.gmra.mrb[0].mxu0 %v1382
  %v1492 = vpop.f32.mrb[0].mxu0
  %v1493 = vadd.f32 %v1244, %v1492
  %v1494 = vpop.f32.mrb[0].mxu0
  %v1495 = vpop.f32.mrb[0].mxu0
  %v1496 = vadd.f32 %v1247, %v1495
  %v1497 = vpop.f32.mrb[0].mxu0
  %1498 = vmatprep.mubr.bf16.mxu0 0
  %1499 = vmatmul.mubr.bf16.gmra.mrb[0].mxu0 %v1385
  %v1500 = vpop.f32.mrb[0].mxu0
  %v1501 = vadd.f32 %v1252, %v1500
  %v1502 = vpop.f32.mrb[0].mxu0
  %v1503 = vpop.f32.mrb[0].mxu0
  %v1504 = vadd.f32 %v1255, %v1503
  %v1505 = vpop.f32.mrb[0].mxu0
  %1506 = vmatprep.mubr.bf16.mxu0 0
  %1507 = vmatmul.mubr.bf16.gmra.mrb[0].mxu0 %v1388
  %v1508 = vpop.f32.mrb[0].mxu0
  %v1509 = vadd.f32 %v1260, %v1508
  %v1510 = vpop.f32.mrb[0].mxu0
  %v1511 = vpop.f32.mrb[0].mxu0
  %v1512 = vadd.f32 %v1263, %v1511
  %v1513 = vpop.f32.mrb[0].mxu0
  %1514 = vmatprep.mubr.bf16.mxu0 0
  %1515 = vmatmul.mubr.bf16.gmra.mrb[0].mxu0 %v1391
  %v1516 = vpop.f32.mrb[0].mxu0
  %v1517 = vadd.f32 %v1268, %v1516
  %v1518 = vpop.f32.mrb[0].mxu0
  %v1519 = vpop.f32.mrb[0].mxu0
  %v1520 = vadd.f32 %v1271, %v1519
  %v1521 = vpop.f32.mrb[0].mxu0
  %1522 = vmatprep.mubr.bf16.mxu0 0
  %1523 = vmatmul.mubr.bf16.gmra.mrb[0].mxu0 %v1394
  %v1524 = vpop.f32.mrb[0].mxu0
  %v1525 = vadd.f32 %v1276, %v1524
  %v1526 = vpop.f32.mrb[0].mxu0
  %v1527 = vpop.f32.mrb[0].mxu0
  %v1528 = vadd.f32 %v1279, %v1527
  %v1529 = vpop.f32.mrb[0].mxu0
  %1530 = vmatprep.mubr.bf16.mxu0 0
  %1531 = vmatmul.mubr.bf16.gmra.mrb[0].mxu0 %v1397
  %v1532 = vpop.f32.mrb[0].mxu0
  %v1533 = vadd.f32 %v1284, %v1532
  %v1534 = vpop.f32.mrb[0].mxu0
  %v1535 = vpop.f32.mrb[0].mxu0
  %v1536 = vadd.f32 %v1287, %v1535
  %v1537 = vpop.f32.mrb[0].mxu0
  %1538 = vmatprep.mubr.bf16.mxu0 0
  %1539 = vmatmul.mubr.bf16.gmra.mrb[0].mxu0 %v1400
  %v1540 = vpop.f32.mrb[0].mxu0
  %v1541 = vadd.f32 %v1292, %v1540
  %v1542 = vpop.f32.mrb[0].mxu0
  %v1543 = vpop.f32.mrb[0].mxu0
  %v1544 = vadd.f32 %v1295, %v1543
  %v1545 = vpop.f32.mrb[0].mxu0
  %1546 = vmatprep.mubr.bf16.mxu0 0
  %1547 = vmatmul.mubr.bf16.gmra.mrb[0].mxu0 %v1403
  %v1548 = vpop.f32.mrb[0].mxu0
  %v1549 = vadd.f32 %v1300, %v1548
  %v1550 = vpop.f32.mrb[0].mxu0
  %v1551 = vpop.f32.mrb[0].mxu0
  %v1552 = vadd.f32 %v1303, %v1551
  %v1553 = vpop.f32.mrb[0].mxu0
  %1554 = vmatprep.mubr.bf16.mxu0 0
  %1555 = vmatmul.mubr.bf16.gmra.mrb[0].mxu0 %v1406
  %v1556 = vpop.f32.mrb[0].mxu0
  %v1557 = vadd.f32 %v1308, %v1556
  %v1558 = vpop.f32.mrb[0].mxu0
  %v1559 = vpop.f32.mrb[0].mxu0
  %v1560 = vadd.f32 %v1311, %v1559
  %v1561 = vpop.f32.mrb[0].mxu0
  %1562 = vmatprep.mubr.bf16.mxu0 0
  %1563 = vmatmul.mubr.bf16.gmra.mrb[0].mxu0 %v1409
  %v1564 = vpop.f32.mrb[0].mxu0
  %v1565 = vadd.f32 %v1316, %v1564
  %v1566 = vpop.f32.mrb[0].mxu0
  %v1567 = vpop.f32.mrb[0].mxu0
  %v1568 = vadd.f32 %v1319, %v1567
  %v1569 = vpop.f32.mrb[0].mxu0
  %1570 = vmatprep.mubr.bf16.mxu0 0
  %1571 = vmatmul.mubr.bf16.gmra.mrb[0].mxu0 %v1412
  %v1572 = vpop.f32.mrb[0].mxu0
  %v1573 = vadd.f32 %v1324, %v1572
  %v1574 = vpop.f32.mrb[0].mxu0
  %v1575 = vpop.f32.mrb[0].mxu0
  %v1576 = vadd.f32 %v1327, %v1575
  %v1577 = vpop.f32.mrb[0].mxu0
  %1578 = vmatprep.mubr.bf16.mxu0 0
  %1579 = vmatmul.mubr.bf16.gmra.mrb[0].mxu0 %v1415
  %v1580 = vpop.f32.mrb[0].mxu0
  %v1581 = vadd.f32 %v1332, %v1580
  %v1582 = vpop.f32.mrb[0].mxu0
  %v1583 = vpop.f32.mrb[0].mxu0
  %v1584 = vadd.f32 %v1335, %v1583
  %v1585 = vpop.f32.mrb[0].mxu0
  %1586 = vmatprep.mubr.bf16.mxu0 0
  %1587 = vmatmul.mubr.bf16.gmra.mrb[0].mxu0 %v1418
  %v1588 = vpop.f32.mrb[0].mxu0
  %v1589 = vadd.f32 %v1340, %v1588
  %v1590 = vpop.f32.mrb[0].mxu0
  %v1591 = vpop.f32.mrb[0].mxu0
  %v1592 = vadd.f32 %v1343, %v1591
  %v1593 = vpop.f32.mrb[0].mxu0
  %1594 = vmatprep.mubr.bf16.mxu0 0
  %1595 = vmatmul.mubr.bf16.gmra.mrb[0].mxu0 %v1421
  %v1596 = vpop.f32.mrb[0].mxu0
  %v1597 = vadd.f32 %v1348, %v1596
  %v1598 = vpop.f32.mrb[0].mxu0
  %v1599 = vpop.f32.mrb[0].mxu0
  %v1600 = vadd.f32 %v1351, %v1599
  %v1601 = vpop.f32.mrb[0].mxu0
  %1602 = vmatprep.mubr.bf16.mxu0 0
  %1603 = vmatmul.mubr.bf16.gmra.mrb[0].mxu0 %v1424
  %v1604 = vpop.f32.mrb[0].mxu0
  %v1605 = vadd.f32 %v1356, %v1604
  %v1606 = vpop.f32.mrb[0].mxu0
  %v1607 = vpop.f32.mrb[0].mxu0
  %v1608 = vadd.f32 %v1359, %v1607
  %v1609 = vpop.f32.mrb[0].mxu0
  %1610 = vdwg.mxu0
  %v1611 = vld [vmem:[%s6] sm:$0x1]
  %v1613 = vlaneseq
  %v1614 = vshrl.u32 %v1613, 7
  %v1615 = vsub.s32 0, %v1614
  %v1616 = vrot.slane %v1611, %v1615
  %v1618 = vadd.f32 %v1461, %v1616
  %v1619 = vadd.f32 %v1464, %v1616
  %v1620 = vadd.f32 %v1469, %v1616
  %v1621 = vadd.f32 %v1472, %v1616
  %v1622 = vadd.f32 %v1477, %v1616
  %v1623 = vadd.f32 %v1480, %v1616
  %v1624 = vadd.f32 %v1485, %v1616
  %v1625 = vadd.f32 %v1488, %v1616
  %v1626 = vadd.f32 %v1493, %v1616
  %v1627 = vadd.f32 %v1496, %v1616
  %v1628 = vadd.f32 %v1501, %v1616
  %v1629 = vadd.f32 %v1504, %v1616
  %v1630 = vadd.f32 %v1509, %v1616
  %v1631 = vadd.f32 %v1512, %v1616
  %v1632 = vadd.f32 %v1517, %v1616
  %v1633 = vadd.f32 %v1520, %v1616
  %v1634 = vadd.f32 %v1525, %v1616
  %v1635 = vadd.f32 %v1528, %v1616
  %v1636 = vadd.f32 %v1533, %v1616
  %v1637 = vadd.f32 %v1536, %v1616
  %v1638 = vadd.f32 %v1541, %v1616
  %v1639 = vadd.f32 %v1544, %v1616
  %v1640 = vadd.f32 %v1549, %v1616
  %v1641 = vadd.f32 %v1552, %v1616
  %v1642 = vadd.f32 %v1557, %v1616
  %v1643 = vadd.f32 %v1560, %v1616
  %v1644 = vadd.f32 %v1565, %v1616
  %v1645 = vadd.f32 %v1568, %v1616
  %v1646 = vadd.f32 %v1573, %v1616
  %v1647 = vadd.f32 %v1576, %v1616
  %v1648 = vadd.f32 %v1581, %v1616
  %v1649 = vadd.f32 %v1584, %v1616
  %v1650 = vadd.f32 %v1589, %v1616
  %v1651 = vadd.f32 %v1592, %v1616
  %v1652 = vadd.f32 %v1597, %v1616
  %v1653 = vadd.f32 %v1600, %v1616
  %v1654 = vadd.f32 %v1605, %v1616
  %v1655 = vadd.f32 %v1608, %v1616
  %v1656 = vxor.u32 %v1618, 2147483648
  %v1657 = vxor.u32 %v1619, 2147483648
  %v1658 = vxor.u32 %v1620, 2147483648
  %v1659 = vxor.u32 %v1621, 2147483648
  %v1660 = vxor.u32 %v1622, 2147483648
  %v1661 = vxor.u32 %v1623, 2147483648
  %v1662 = vxor.u32 %v1624, 2147483648
  %v1663 = vxor.u32 %v1625, 2147483648
  %v1664 = vxor.u32 %v1626, 2147483648
  %v1665 = vxor.u32 %v1627, 2147483648
  %v1666 = vxor.u32 %v1628, 2147483648
  %v1667 = vxor.u32 %v1629, 2147483648
  %v1668 = vxor.u32 %v1630, 2147483648
  %v1669 = vxor.u32 %v1631, 2147483648
  %v1670 = vxor.u32 %v1632, 2147483648
  %v1671 = vxor.u32 %v1633, 2147483648
  %v1672 = vxor.u32 %v1634, 2147483648
  %v1673 = vxor.u32 %v1635, 2147483648
  %v1674 = vxor.u32 %v1636, 2147483648
  %v1675 = vxor.u32 %v1637, 2147483648
  %v1676 = vxor.u32 %v1638, 2147483648
  %v1677 = vxor.u32 %v1639, 2147483648
  %v1678 = vxor.u32 %v1640, 2147483648
  %v1679 = vxor.u32 %v1641, 2147483648
  %v1680 = vxor.u32 %v1642, 2147483648
  %v1681 = vxor.u32 %v1643, 2147483648
  %v1682 = vxor.u32 %v1644, 2147483648
  %v1683 = vxor.u32 %v1645, 2147483648
  %v1684 = vxor.u32 %v1646, 2147483648
  %v1685 = vxor.u32 %v1647, 2147483648
  %v1686 = vxor.u32 %v1648, 2147483648
  %v1687 = vxor.u32 %v1649, 2147483648
  %v1688 = vxor.u32 %v1650, 2147483648
  %v1689 = vxor.u32 %v1651, 2147483648
  %v1690 = vxor.u32 %v1652, 2147483648
  %v1691 = vxor.u32 %v1653, 2147483648
  %v1692 = vxor.u32 %v1654, 2147483648
  %v1693 = vxor.u32 %v1655, 2147483648
  %v1694 = vmul.f32 %v1656, 1.442695
  %v1695 = vpow.pop %v1694
  %v1696 = vmul.f32 %v1657, 1.442695
  %v1697 = vpow.pop %v1696
  %v1698 = vmul.f32 %v1658, 1.442695
  %v1699 = vpow.pop %v1698
  %v1700 = vmul.f32 %v1659, 1.442695
  %v1701 = vpow.pop %v1700
  %v1702 = vmul.f32 %v1660, 1.442695
  %v1703 = vpow.pop %v1702
  %v1704 = vmul.f32 %v1661, 1.442695
  %v1705 = vpow.pop %v1704
  %v1706 = vmul.f32 %v1662, 1.442695
  %v1707 = vpow.pop %v1706
  %v1708 = vmul.f32 %v1663, 1.442695
  %v1709 = vpow.pop %v1708
  %v1710 = vmul.f32 %v1664, 1.442695
  %v1711 = vpow.pop %v1710
  %v1712 = vmul.f32 %v1665, 1.442695
  %v1713 = vpow.pop %v1712
  %v1714 = vmul.f32 %v1666, 1.442695
  %v1715 = vpow.pop %v1714
  %v1716 = vmul.f32 %v1667, 1.442695
  %v1717 = vpow.pop %v1716
  %v1718 = vmul.f32 %v1668, 1.442695
  %v1719 = vpow.pop %v1718
  %v1720 = vmul.f32 %v1669, 1.442695
  %v1721 = vpow.pop %v1720
  %v1722 = vmul.f32 %v1670, 1.442695
  %v1723 = vpow.pop %v1722
  %v1724 = vmul.f32 %v1671, 1.442695
  %v1725 = vpow.pop %v1724
  %v1726 = vmul.f32 %v1672, 1.442695
  %v1727 = vpow.pop %v1726
  %v1728 = vmul.f32 %v1673, 1.442695
  %v1729 = vpow.pop %v1728
  %v1730 = vmul.f32 %v1674, 1.442695
  %v1731 = vpow.pop %v1730
  %v1732 = vmul.f32 %v1675, 1.442695
  %v1733 = vpow.pop %v1732
  %v1734 = vmul.f32 %v1676, 1.442695
  %v1735 = vpow.pop %v1734
  %v1736 = vmul.f32 %v1677, 1.442695
  %v1737 = vpow.pop %v1736
  %v1738 = vmul.f32 %v1678, 1.442695
  %v1739 = vpow.pop %v1738
  %v1740 = vmul.f32 %v1679, 1.442695
  %v1741 = vpow.pop %v1740
  %v1742 = vmul.f32 %v1680, 1.442695
  %v1743 = vpow.pop %v1742
  %v1744 = vmul.f32 %v1681, 1.442695
  %v1745 = vpow.pop %v1744
  %v1746 = vmul.f32 %v1682, 1.442695
  %v1747 = vpow.pop %v1746
  %v1748 = vmul.f32 %v1683, 1.442695
  %v1749 = vpow.pop %v1748
  %v1750 = vmul.f32 %v1684, 1.442695
  %v1751 = vpow.pop %v1750
  %v1752 = vmul.f32 %v1685, 1.442695
  %v1753 = vpow.pop %v1752
  %v1754 = vmul.f32 %v1686, 1.442695
  %v1755 = vpow.pop %v1754
  %v1756 = vmul.f32 %v1687, 1.442695
  %v1757 = vpow.pop %v1756
  %v1758 = vmul.f32 %v1688, 1.442695
  %v1759 = vpow.pop %v1758
  %v1760 = vmul.f32 %v1689, 1.442695
  %v1761 = vpow.pop %v1760
  %v1762 = vmul.f32 %v1690, 1.442695
  %v1763 = vpow.pop %v1762
  %v1764 = vmul.f32 %v1691, 1.442695
  %v1765 = vpow.pop %v1764
  %v1766 = vmul.f32 %v1692, 1.442695
  %v1767 = vpow.pop %v1766
  %v1768 = vmul.f32 %v1693, 1.442695
  %v1769 = vpow.pop %v1768
  %v1770 = vadd.f32 %v1695, 1.0
  %v1771 = vadd.f32 %v1697, 1.0
  %v1772 = vadd.f32 %v1699, 1.0
  %v1773 = vadd.f32 %v1701, 1.0
  %v1774 = vadd.f32 %v1703, 1.0
  %v1775 = vadd.f32 %v1705, 1.0
  %v1776 = vadd.f32 %v1707, 1.0
  %v1777 = vadd.f32 %v1709, 1.0
  %v1778 = vadd.f32 %v1711, 1.0
  %v1779 = vadd.f32 %v1713, 1.0
  %v1780 = vadd.f32 %v1715, 1.0
  %v1781 = vadd.f32 %v1717, 1.0
  %v1782 = vadd.f32 %v1719, 1.0
  %v1783 = vadd.f32 %v1721, 1.0
  %v1784 = vadd.f32 %v1723, 1.0
  %v1785 = vadd.f32 %v1725, 1.0
  %v1786 = vadd.f32 %v1727, 1.0
  %v1787 = vadd.f32 %v1729, 1.0
  %v1788 = vadd.f32 %v1731, 1.0
  %v1789 = vadd.f32 %v1733, 1.0
  %v1790 = vadd.f32 %v1735, 1.0
  %v1791 = vadd.f32 %v1737, 1.0
  %v1792 = vadd.f32 %v1739, 1.0
  %v1793 = vadd.f32 %v1741, 1.0
  %v1794 = vadd.f32 %v1743, 1.0
  %v1795 = vadd.f32 %v1745, 1.0
  %v1796 = vadd.f32 %v1747, 1.0
  %v1797 = vadd.f32 %v1749, 1.0
  %v1798 = vadd.f32 %v1751, 1.0
  %v1799 = vadd.f32 %v1753, 1.0
  %v1800 = vadd.f32 %v1755, 1.0
  %v1801 = vadd.f32 %v1757, 1.0
  %v1802 = vadd.f32 %v1759, 1.0
  %v1803 = vadd.f32 %v1761, 1.0
  %v1804 = vadd.f32 %v1763, 1.0
  %v1805 = vadd.f32 %v1765, 1.0
  %v1806 = vadd.f32 %v1767, 1.0
  %v1807 = vadd.f32 %v1769, 1.0
  %v1808 = vrcp.pop %v1770
  %v1809 = vmul.f32 1.0, %v1808
  %v1810 = vrcp.pop %v1771
  %v1811 = vmul.f32 1.0, %v1810
  %v1812 = vrcp.pop %v1772
  %v1813 = vmul.f32 1.0, %v1812
  %v1814 = vrcp.pop %v1773
  %v1815 = vmul.f32 1.0, %v1814
  %v1816 = vrcp.pop %v1774
  %v1817 = vmul.f32 1.0, %v1816
  %v1818 = vrcp.pop %v1775
  %v1819 = vmul.f32 1.0, %v1818
  %v1820 = vrcp.pop %v1776
  %v1821 = vmul.f32 1.0, %v1820
  %v1822 = vrcp.pop %v1777
  %v1823 = vmul.f32 1.0, %v1822
  %v1824 = vrcp.pop %v1778
  %v1825 = vmul.f32 1.0, %v1824
  %v1826 = vrcp.pop %v1779
  %v1827 = vmul.f32 1.0, %v1826
  %v1828 = vrcp.pop %v1780
  %v1829 = vmul.f32 1.0, %v1828
  %v1830 = vrcp.pop %v1781
  %v1831 = vmul.f32 1.0, %v1830
  %v1832 = vrcp.pop %v1782
  %v1833 = vmul.f32 1.0, %v1832
  %v1834 = vrcp.pop %v1783
  %v1835 = vmul.f32 1.0, %v1834
  %v1836 = vrcp.pop %v1784
  %v1837 = vmul.f32 1.0, %v1836
  %v1838 = vrcp.pop %v1785
  %v1839 = vmul.f32 1.0, %v1838
  %v1840 = vrcp.pop %v1786
  %v1841 = vmul.f32 1.0, %v1840
  %v1842 = vrcp.pop %v1787
  %v1843 = vmul.f32 1.0, %v1842
  %v1844 = vrcp.pop %v1788
  %v1845 = vmul.f32 1.0, %v1844
  %v1846 = vrcp.pop %v1789
  %v1847 = vmul.f32 1.0, %v1846
  %v1848 = vrcp.pop %v1790
  %v1849 = vmul.f32 1.0, %v1848
  %v1850 = vrcp.pop %v1791
  %v1851 = vmul.f32 1.0, %v1850
  %v1852 = vrcp.pop %v1792
  %v1853 = vmul.f32 1.0, %v1852
  %v1854 = vrcp.pop %v1793
  %v1855 = vmul.f32 1.0, %v1854
  %v1856 = vrcp.pop %v1794
  %v1857 = vmul.f32 1.0, %v1856
  %v1858 = vrcp.pop %v1795
  %v1859 = vmul.f32 1.0, %v1858
  %v1860 = vrcp.pop %v1796
  %v1861 = vmul.f32 1.0, %v1860
  %v1862 = vrcp.pop %v1797
  %v1863 = vmul.f32 1.0, %v1862
  %v1864 = vrcp.pop %v1798
  %v1865 = vmul.f32 1.0, %v1864
  %v1866 = vrcp.pop %v1799
  %v1867 = vmul.f32 1.0, %v1866
  %v1868 = vrcp.pop %v1800
  %v1869 = vmul.f32 1.0, %v1868
  %v1870 = vrcp.pop %v1801
  %v1871 = vmul.f32 1.0, %v1870
  %v1872 = vrcp.pop %v1802
  %v1873 = vmul.f32 1.0, %v1872
  %v1874 = vrcp.pop %v1803
  %v1875 = vmul.f32 1.0, %v1874
  %v1876 = vrcp.pop %v1804
  %v1877 = vmul.f32 1.0, %v1876
  %v1878 = vrcp.pop %v1805
  %v1879 = vmul.f32 1.0, %v1878
  %v1880 = vrcp.pop %v1806
  %v1881 = vmul.f32 1.0, %v1880
  %v1882 = vrcp.pop %v1807
  %v1883 = vmul.f32 1.0, %v1882
  %v1884 = vmul.f32 %v1618, %v1809
  %v1885 = vmul.f32 %v1619, %v1811
  %v1886 = vmul.f32 %v1620, %v1813
  %v1887 = vmul.f32 %v1621, %v1815
  %v1888 = vmul.f32 %v1622, %v1817
  %v1889 = vmul.f32 %v1623, %v1819
  %v1890 = vmul.f32 %v1624, %v1821
  %v1891 = vmul.f32 %v1625, %v1823
  %v1892 = vmul.f32 %v1626, %v1825
  %v1893 = vmul.f32 %v1627, %v1827
  %v1894 = vmul.f32 %v1628, %v1829
  %v1895 = vmul.f32 %v1629, %v1831
  %v1896 = vmul.f32 %v1630, %v1833
  %v1897 = vmul.f32 %v1631, %v1835
  %v1898 = vmul.f32 %v1632, %v1837
  %v1899 = vmul.f32 %v1633, %v1839
  %v1900 = vmul.f32 %v1634, %v1841
  %v1901 = vmul.f32 %v1635, %v1843
  %v1902 = vmul.f32 %v1636, %v1845
  %v1903 = vmul.f32 %v1637, %v1847
  %v1904 = vmul.f32 %v1638, %v1849
  %v1905 = vmul.f32 %v1639, %v1851
  %v1906 = vmul.f32 %v1640, %v1853
  %v1907 = vmul.f32 %v1641, %v1855
  %v1908 = vmul.f32 %v1642, %v1857
  %v1909 = vmul.f32 %v1643, %v1859
  %v1910 = vmul.f32 %v1644, %v1861
  %v1911 = vmul.f32 %v1645, %v1863
  %v1912 = vmul.f32 %v1646, %v1865
  %v1913 = vmul.f32 %v1647, %v1867
  %v1914 = vmul.f32 %v1648, %v1869
  %v1915 = vmul.f32 %v1649, %v1871
  %v1916 = vmul.f32 %v1650, %v1873
  %v1917 = vmul.f32 %v1651, %v1875
  %v1918 = vmul.f32 %v1652, %v1877
  %v1919 = vmul.f32 %v1653, %v1879
  %v1920 = vmul.f32 %v1654, %v1881
  %v1921 = vmul.f32 %v1655, %v1883
  %1922 = vst.msk [vmem:[%s7] sm:$0xff] %vm1119, %v1884
  %1923 = vst.msk [vmem:[%s7 + $0x8] sm:$0xff] %vm1119, %v1885
  %1924 = vst.msk [vmem:[%s7 + $0x10] sm:$0xff] %vm1119, %v1886
  %1925 = vst.msk [vmem:[%s7 + $0x18] sm:$0xff] %vm1119, %v1887
  %1926 = vst.msk [vmem:[%s7 + $0x20] sm:$0xff] %vm1119, %v1888
  %1927 = vst.msk [vmem:[%s7 + $0x28] sm:$0xff] %vm1119, %v1889
  %1928 = vst.msk [vmem:[%s7 + $0x30] sm:$0xff] %vm1119, %v1890
  %1929 = vst.msk [vmem:[%s7 + $0x38] sm:$0xff] %vm1119, %v1891
  %1930 = vst.msk [vmem:[%s7 + $0x40] sm:$0xff] %vm1119, %v1892
  %1931 = vst.msk [vmem:[%s7 + $0x48] sm:$0xff] %vm1119, %v1893
  %1932 = vst.msk [vmem:[%s7 + $0x50] sm:$0xff] %vm1119, %v1894
  %1933 = vst.msk [vmem:[%s7 + $0x58] sm:$0xff] %vm1119, %v1895
  %1934 = vst.msk [vmem:[%s7 + $0x60] sm:$0xff] %vm1119, %v1896
  %1935 = vst.msk [vmem:[%s7 + $0x68] sm:$0xff] %vm1119, %v1897
  %1936 = vst.msk [vmem:[%s7 + $0x70] sm:$0xff] %vm1119, %v1898
  %1937 = vst.msk [vmem:[%s7 + $0x78] sm:$0xff] %vm1119, %v1899
  %1938 = vst.msk [vmem:[%s7 + $0x80] sm:$0xff] %vm1119, %v1900
  %1939 = vst.msk [vmem:[%s7 + $0x88] sm:$0xff] %vm1119, %v1901
  %1940 = vst.msk [vmem:[%s7 + $0x90] sm:$0xff] %vm1119, %v1902
  %1941 = vst.msk [vmem:[%s7 + $0x98] sm:$0xff] %vm1119, %v1903
  %1942 = vst.msk [vmem:[%s7 + $0xa0] sm:$0xff] %vm1119, %v1904
  %1943 = vst.msk [vmem:[%s7 + $0xa8] sm:$0xff] %vm1119, %v1905
  %1944 = vst.msk [vmem:[%s7 + $0xb0] sm:$0xff] %vm1119, %v1906
  %1945 = vst.msk [vmem:[%s7 + $0xb8] sm:$0xff] %vm1119, %v1907
  %1946 = vst.msk [vmem:[%s7 + $0xc0] sm:$0xff] %vm1119, %v1908
  %1947 = vst.msk [vmem:[%s7 + $0xc8] sm:$0xff] %vm1119, %v1909
  %1948 = vst.msk [vmem:[%s7 + $0xd0] sm:$0xff] %vm1119, %v1910
  %1949 = vst.msk [vmem:[%s7 + $0xd8] sm:$0xff] %vm1119, %v1911
  %1950 = vst.msk [vmem:[%s7 + $0xe0] sm:$0xff] %vm1119, %v1912
  %1951 = vst.msk [vmem:[%s7 + $0xe8] sm:$0xff] %vm1119, %v1913
  %1952 = vst.msk [vmem:[%s7 + $0xf0] sm:$0xff] %vm1119, %v1914
  %1953 = vst.msk [vmem:[%s7 + $0xf8] sm:$0xff] %vm1119, %v1915
  %1954 = vst.msk [vmem:[%s7 + $0x100] sm:$0xff] %vm1119, %v1916
  %1955 = vst.msk [vmem:[%s7 + $0x108] sm:$0xff] %vm1119, %v1917
  %1956 = vst.msk [vmem:[%s7 + $0x110] sm:$0xff] %vm1119, %v1918
  %1957 = vst.msk [vmem:[%s7 + $0x118] sm:$0xff] %vm1119, %v1919
  %1958 = vst.msk [vmem:[%s7 + $0x120] sm:$0xff] %vm1119, %v1920
  %vm1959 = vcmask 257024
  %1960 = vst.msk [vmem:[%s7 + $0x128] sm:$0xf] %vm1959, %v1921
  // Predicated region
  $region30: #{tpu_custom_call.1} parent=0 // pred_check
    _
  $region31: #{tpu_custom_call.1} parent=0 // pred_check_branch
    %1962 = sbr.rel (0) target = $region33
  $region32: #{tpu_custom_call.1} parent=0 // pred_region
    _
  $region33: #{tpu_custom_call.1} parent=0 // pred_fallthru
    _
  // Predicated region
  $region34: #{tpu_custom_call.1} parent=0 // pred_check
    _
  $region35: #{tpu_custom_call.1} parent=0 // pred_check_branch
    %1964 = sbr.rel (0) target = $region37
  $region36: #{tpu_custom_call.1} parent=0 // pred_region
    _
  $region37: #{tpu_custom_call.1} parent=0 // pred_fallthru
    _

</llo_original>
